<compile_context>
chip_gen: v7x
topology: tpu7x:2x2x1
jax: 0.10.0
libtpu: 0.0.40
codegen_flags: <defaults>
</compile_context>

<pallas_src>
import math
import functools

import jax
import jax.numpy as jnp
from jax.experimental import pallas as pl
from jax.experimental.pallas import tpu as pltpu


MASK_VALUE = -0.7 * float(jnp.finfo(jnp.float32).max)


def _pick_tile(dim, target, align):
    """Largest tile <= target that divides `dim` and is a multiple of `align`;
    falls back to the full dimension (always a legal block)."""
    t = min(target, dim)
    t -= t % align
    while t >= align:
        if dim % t == 0:
            return t
        t -= align
    return dim


# --------------------------- tiled linear (matmul) ---------------------------

def _linear_kernel(x_ref, w_ref, o_ref, acc_ref):
    @pl.when(pl.program_id(2) == 0)
    def _():
        acc_ref[...] = jnp.zeros_like(acc_ref)

    acc_ref[...] += jnp.dot(x_ref[...], w_ref[...],
                            preferred_element_type=jnp.float32)

    @pl.when(pl.program_id(2) == pl.num_programs(2) - 1)
    def _():
        o_ref[...] = acc_ref[...].astype(o_ref.dtype)


def pallas_linear(x2d, w, *, tm_target=256, tn_target=256, tk_target=512):
    """x2d: (M, K), w: (K, N) -> (M, N). No bias (module default)."""
    M, K = x2d.shape
    K2, N = w.shape
    assert K == K2
    tm = _pick_tile(M, tm_target, 8)
    tn = _pick_tile(N, tn_target, 128)
    tk = _pick_tile(K, tk_target, 128)
    return pl.pallas_call(
        _linear_kernel,
        grid=(M // tm, N // tn, K // tk),
        out_shape=jax.ShapeDtypeStruct((M, N), x2d.dtype),
        in_specs=[
            pl.BlockSpec((tm, tk), lambda i, j, k: (i, k)),
            pl.BlockSpec((tk, tn), lambda i, j, k: (k, j)),
        ],
        out_specs=pl.BlockSpec((tm, tn), lambda i, j, k: (i, j)),
        scratch_shapes=[pltpu.VMEM((tm, tn), jnp.float32)],
        compiler_params=pltpu.CompilerParams(
            dimension_semantics=("parallel", "parallel", "arbitrary")),
    )(x2d, w)


# --------------------------- causal GQA flash attention ----------------------

def _flash_kernel(q_ref, k_ref, v_ref, o_ref, m_sc, l_sc, acc_sc,
                  *, scale, tq, tk, g):
    ki = pl.program_id(3)
    nk = pl.num_programs(3)
    q_start = pl.program_id(2) * tq
    kv_start = ki * tk

    @pl.when(ki == 0)
    def _():
        m_sc[...] = jnp.full_like(m_sc, MASK_VALUE)
        l_sc[...] = jnp.zeros_like(l_sc)
        acc_sc[...] = jnp.zeros_like(acc_sc)

    def _process(apply_mask):
        hd = q_ref.shape[-1]
        # All g query heads of this KV head share the K/V tile (GQA reuse).
        q = q_ref[0, 0].reshape(g * tq, hd)            # (g*tq, hd)
        # Fold 1/sqrt(hd) into the smaller operand (k: tk*hd vs q: g*tq*hd).
        k = k_ref[0, 0] * scale                        # (tk, hd)
        v = v_ref[0, 0]                                # (tk, hd)

        # QK^T without an explicit transpose of K: contract the last dims.
        s = jax.lax.dot_general(
            q, k, (((1,), (1,)), ((), ())),
            preferred_element_type=jnp.float32)        # (g*tq, tk)

        if apply_mask:
            # Only tiles straddling the diagonal pay for the mask.
            row = q_start + (jax.lax.broadcasted_iota(jnp.int32, s.shape, 0) % tq)
            col = kv_start + jax.lax.broadcasted_iota(jnp.int32, s.shape, 1)
            s = jnp.where(col <= row, s, MASK_VALUE)

        m_prev = m_sc[...]
        m_new = jnp.maximum(m_prev, jnp.max(s, axis=-1, keepdims=True))
        alpha = jnp.exp(m_prev - m_new)
        p = jnp.exp(s - m_new)
        l_sc[...] = alpha * l_sc[...] + jnp.sum(p, axis=-1, keepdims=True)
        acc_sc[...] = alpha * acc_sc[...] + jax.lax.dot_general(
            p.astype(v.dtype), v, (((1,), (0,)), ((), ())),
            preferred_element_type=jnp.float32)
        m_sc[...] = m_new

    # Three mutually-exclusive cases per KV tile:
    #   fully above diagonal  -> skipped entirely (no compute, DMA elided)
    #   fully below diagonal  -> mask-free softmax update
    #   straddles diagonal    -> masked softmax update
    fully_visible = kv_start + tk - 1 <= q_start
    on_diagonal = jnp.logical_and(kv_start <= q_start + tq - 1,
                                  kv_start + tk - 1 > q_start)

    @pl.when(fully_visible)
    def _():
        _process(False)

    @pl.when(on_diagonal)
    def _():
        _process(True)

    @pl.when(ki == nk - 1)
    def _():
        hd = o_ref.shape[-1]
        inv_l = pl.reciprocal(l_sc[...], approx=True)   # EUP, not a VALU divide
        o_ref[0, 0] = (acc_sc[...] * inv_l).reshape(g, tq, hd).astype(o_ref.dtype)


def flash_attention(q, k, v):
    """q: (B, Hkv, g, S, hd), k/v: (B, Hkv, S, hd) -> (B, Hkv, g, S, hd).
    Causal, GQA (query head h uses kv head h // g)."""
    B, Hkv, g, S, hd = q.shape
    tq = _pick_tile(S, 128, 8)
    tk = _pick_tile(S, 128, 8)
    scale = 1.0 / math.sqrt(hd)
    kernel = functools.partial(_flash_kernel, scale=scale, tq=tq, tk=tk, g=g)

    # K/V block index clamped to min(i, j): tiles strictly above the diagonal
    # map to the same block as the previous iteration, so Pallas elides their
    # DMA — causal skipping saves bandwidth, not just FLOPs.
    def kv_index_map(b, h, i, j):
        return (b, h, jnp.minimum(i, j), 0)

    return pl.pallas_call(
        kernel,
        grid=(B, Hkv, S // tq, S // tk),
        out_shape=jax.ShapeDtypeStruct((B, Hkv, g, S, hd), q.dtype),
        in_specs=[
            pl.BlockSpec((1, 1, g, tq, hd), lambda b, h, i, j: (b, h, 0, i, 0)),
            pl.BlockSpec((1, 1, tk, hd), kv_index_map),
            pl.BlockSpec((1, 1, tk, hd), kv_index_map),
        ],
        out_specs=pl.BlockSpec((1, 1, g, tq, hd), lambda b, h, i, j: (b, h, 0, i, 0)),
        scratch_shapes=[
            pltpu.VMEM((g * tq, 1), jnp.float32),    # running max
            pltpu.VMEM((g * tq, 1), jnp.float32),    # running denominator
            pltpu.VMEM((g * tq, hd), jnp.float32),   # output accumulator
        ],
        compiler_params=pltpu.CompilerParams(
            dimension_semantics=("parallel", "parallel", "parallel", "arbitrary")),
    )(q, k, v)


# --------------------------------- JAX glue ----------------------------------

def apply_rotary_emb(x, freqs_cis):
    # x: (B, S, H, hd); freqs_cis: (S, hd//2, 2)
    orig_dtype = x.dtype
    xs = x.astype(jnp.float32).reshape(*x.shape[:-1], -1, 2)
    fc = freqs_cis.reshape(1, xs.shape[1], 1, xs.shape[3], 2).astype(jnp.float32)
    out = jnp.stack(
        [
            xs[..., 0] * fc[..., 0] - xs[..., 1] * fc[..., 1],
            xs[..., 1] * fc[..., 0] + xs[..., 0] * fc[..., 1],
        ],
        axis=-1,
    )
    return out.reshape(x.shape).astype(orig_dtype)


def precompute_freqs_cis(seq_len, head_dim, base=10000.0):
    freqs = 1.0 / (base ** (jnp.arange(0, head_dim, 2, dtype=jnp.float32) / head_dim))
    t = jnp.arange(seq_len, dtype=jnp.float32)
    angles = jnp.outer(t, freqs)                            # (S, hd//2)
    return jnp.stack([jnp.cos(angles), jnp.sin(angles)], axis=-1)


def attention_forward(params, x, freqs_cis, *, n_head, n_local_heads, head_dim):
    B, S, D = x.shape
    kv_size = n_local_heads * head_dim
    g = n_head // n_local_heads

    # QKV projection (tiled Pallas matmul)
    qkv = pallas_linear(x.reshape(B * S, D), params["wqkv"]).reshape(B, S, -1)
    q, k, v = jnp.split(qkv, [D, D + kv_size], axis=-1)

    q = q.reshape(B, S, n_head, head_dim)
    k = k.reshape(B, S, n_local_heads, head_dim)
    v = v.reshape(B, S, n_local_heads, head_dim)

    q = apply_rotary_emb(q, freqs_cis)
    k = apply_rotary_emb(k, freqs_cis)

    # heads-major layout; split query heads into (Hkv, g) groups for GQA reuse
    q = jnp.transpose(q, (0, 2, 1, 3)).reshape(B, n_local_heads, g, S, head_dim)
    k = jnp.transpose(k, (0, 2, 1, 3))
    v = jnp.transpose(v, (0, 2, 1, 3))

    y = flash_attention(q, k, v)                           # (B, Hkv, g, S, hd)

    y = y.reshape(B, n_head, S, head_dim)
    y = jnp.transpose(y, (0, 2, 1, 3)).reshape(B, S, D)

    # Output projection (tiled Pallas matmul, no bias)
    out = pallas_linear(y.reshape(B * S, D), params["wo"])
    return out.reshape(B, S, D)


# --------------------------------- reference ---------------------------------

def reference_forward(params, x, freqs_cis, *, n_head, n_local_heads, head_dim):
    B, S, D = x.shape
    kv_size = n_local_heads * head_dim
    g = n_head // n_local_heads
    qkv = (x.reshape(B * S, D) @ params["wqkv"]).reshape(B, S, -1)
    q, k, v = jnp.split(qkv, [D, D + kv_size], axis=-1)
    q = apply_rotary_emb(q.reshape(B, S, n_head, head_dim), freqs_cis)
    k = apply_rotary_emb(k.reshape(B, S, n_local_heads, head_dim), freqs_cis)
    v = v.reshape(B, S, n_local_heads, head_dim)
    q, k, v = [jnp.transpose(t, (0, 2, 1, 3)) for t in (q, k, v)]
    k = jnp.repeat(k, g, axis=1)
    v = jnp.repeat(v, g, axis=1)
    s = jnp.einsum("bhqd,bhkd->bhqk", q, k) / math.sqrt(head_dim)
    causal = jnp.tril(jnp.ones((S, S), dtype=bool))
    s = jnp.where(causal, s, -jnp.inf)
    p = jax.nn.softmax(s, axis=-1)
    y = jnp.einsum("bhqk,bhkd->bhqd", p, v)
    y = jnp.transpose(y, (0, 2, 1, 3)).reshape(B, S, D)
    return y @ params["wo"]


# ----------------------------------- main ------------------------------------

if __name__ == "__main__":
    # Small config consistent with ModelArgs: dim % n_head == 0, GQA heads.
    # S=16 with 8-wide tiles exercises all three KV-tile paths
    # (skipped / fully-visible / diagonal) and the DMA-elision index_map.
    B, S = 2, 16
    dim = 32
    n_head = 4
    n_local_heads = 2
    head_dim = dim // n_head                                  # 8
    total_head_dim = (n_head + 2 * n_local_heads) * head_dim  # 64

    key = jax.random.PRNGKey(0)
    k_x, k_wqkv, k_wo = jax.random.split(key, 3)

    x = jax.random.normal(k_x, (B, S, dim), dtype=jnp.float32)
    freqs_cis = precompute_freqs_cis(S, head_dim)

    # nn.Linear weights are (out, in); store transposed (in, out) for y = x @ W.T
    wqkv_t = (jax.random.normal(k_wqkv, (total_head_dim, dim), jnp.float32)
              * (1.0 / math.sqrt(dim))).T
    wo_t = (jax.random.normal(k_wo, (dim, dim), jnp.float32)
            * (1.0 / math.sqrt(dim))).T

    params = {
        "wqkv": wqkv_t,   # (dim, total_head_dim)   (has_qkv_bias=False -> no bias)
        "wo": wo_t,       # (dim, dim)              (wo has no bias)
    }

    fwd = jax.jit(functools.partial(
        attention_forward,
        n_head=n_head, n_local_heads=n_local_heads, head_dim=head_dim))

    out = fwd(params, x, freqs_cis)
    jax.block_until_ready(out)

    ref = reference_forward(params, x, freqs_cis, n_head=n_head,
                            n_local_heads=n_local_heads, head_dim=head_dim)

    assert out.shape == (B, S, dim) and out.dtype == jnp.float32
    assert bool(jnp.all(jnp.isfinite(out)))
    assert bool(jnp.allclose(out, ref, rtol=2e-2, atol=2e-2)), (
        float(jnp.max(jnp.abs(out - ref))))
    print("KERNEL_OK")
</pallas_src>

<mosaic_0001>
module attributes {stable_mosaic.version = 11 : i64} {
  func.func @_linear_kernel(%arg0: i32, %arg1: i32, %arg2: i32, %arg3: memref<32x32xf32, #tpu.memory_space<vmem>>, %arg4: memref<32x64xf32, #tpu.memory_space<vmem>>, %arg5: memref<32x64xf32, #tpu.memory_space<vmem>>, %arg6: memref<32x64xf32, #tpu.memory_space<vmem>>) attributes {dimension_semantics = [#tpu.dimension_semantics<parallel>, #tpu.dimension_semantics<parallel>, #tpu.dimension_semantics<arbitrary>], iteration_bounds = array<i64: 1, 1, 1>, scalar_prefetch = 0 : i64, scratch_operands = 1 : i64, tpu.core_type = #tpu.core_type<tc>, window_params = [{transform_indices = @transform_0, window_bounds = array<i64: 32, 32>}, {transform_indices = @transform_1, window_bounds = array<i64: 32, 64>}, {transform_indices = @transform_2, window_bounds = array<i64: 32, 64>}]} {
    %c0_i32 = arith.constant 0 : i32
    %0 = arith.cmpi eq, %arg2, %c0_i32 : i32
    %1 = arith.extui %0 : i1 to i32
    %c0_i32_0 = arith.constant 0 : i32
    %2 = arith.cmpi ne, %1, %c0_i32_0 : i32
    scf.if %2 {
      %cst_10 = arith.constant 0.000000e+00 : f32
      %12 = vector.broadcast %cst_10 : f32 to vector<32x64xf32>
      %c0_11 = arith.constant 0 : index
      %c0_12 = arith.constant 0 : index
      %13 = vector.load %arg6[%c0_11, %c0_12] : memref<32x64xf32, #tpu.memory_space<vmem>>, vector<32x64xf32>
      tpu.vector_store %arg6[%c0_11, %c0_12], %12 {strides = array<i32>} : memref<32x64xf32, #tpu.memory_space<vmem>>, vector<32x64xf32>,
    } else {
    }
    %c0 = arith.constant 0 : index
    %c0_1 = arith.constant 0 : index
    %3 = vector.load %arg6[%c0, %c0_1] : memref<32x64xf32, #tpu.memory_space<vmem>>, vector<32x64xf32>
    %c0_2 = arith.constant 0 : index
    %c0_3 = arith.constant 0 : index
    %4 = vector.load %arg3[%c0_2, %c0_3] : memref<32x32xf32, #tpu.memory_space<vmem>>, vector<32x32xf32>
    %c0_4 = arith.constant 0 : index
    %c0_5 = arith.constant 0 : index
    %5 = vector.load %arg4[%c0_4, %c0_5] : memref<32x64xf32, #tpu.memory_space<vmem>>, vector<32x64xf32>
    %cst = arith.constant dense<0.000000e+00> : vector<32x64xf32>
    %6 = tpu.matmul %4, %5, %cst {dimension_numbers = #tpu.dot_dimension_numbers<[1], [0], [0], [1], [0, 0, 1, 1], [], []>} : vector<32x32xf32>, vector<32x64xf32>, vector<32x64xf32> -> vector<32x64xf32>
    %7 = arith.addf %3, %6 : vector<32x64xf32>
    %c0_6 = arith.constant 0 : index
    %c0_7 = arith.constant 0 : index
    %8 = vector.load %arg6[%c0_6, %c0_7] : memref<32x64xf32, #tpu.memory_space<vmem>>, vector<32x64xf32>
    tpu.vector_store %arg6[%c0_6, %c0_7], %7 {strides = array<i32>} : memref<32x64xf32, #tpu.memory_space<vmem>>, vector<32x64xf32>,
    %c0_i32_8 = arith.constant 0 : i32
    %9 = arith.cmpi eq, %arg2, %c0_i32_8 : i32
    %10 = arith.extui %9 : i1 to i32
    %c0_i32_9 = arith.constant 0 : i32
    %11 = arith.cmpi ne, %10, %c0_i32_9 : i32
    scf.if %11 {
      %c0_10 = arith.constant 0 : index
      %c0_11 = arith.constant 0 : index
      %12 = vector.load %arg6[%c0_10, %c0_11] : memref<32x64xf32, #tpu.memory_space<vmem>>, vector<32x64xf32>
      %c0_12 = arith.constant 0 : index
      %c0_13 = arith.constant 0 : index
      %13 = vector.load %arg5[%c0_12, %c0_13] : memref<32x64xf32, #tpu.memory_space<vmem>>, vector<32x64xf32>
      tpu.vector_store %arg5[%c0_12, %c0_13], %12 {strides = array<i32>} : memref<32x64xf32, #tpu.memory_space<vmem>>, vector<32x64xf32>,
    } else {
    }
    return
  }
  func.func @transform_0(%arg0: i32, %arg1: i32, %arg2: i32) -> (i32, i32) {
    %c0_i32 = arith.constant 0 : i32
    return %arg0, %arg2 : i32, i32
  }
  func.func @transform_1(%arg0: i32, %arg1: i32, %arg2: i32) -> (i32, i32) {
    %c0_i32 = arith.constant 0 : i32
    return %arg2, %arg1 : i32, i32
  }
  func.func @transform_2(%arg0: i32, %arg1: i32, %arg2: i32) -> (i32, i32) {
    %c0_i32 = arith.constant 0 : i32
    return %arg0, %arg1 : i32, i32
  }
}

module attributes {stable_mosaic.version = 11 : i64} {
  func.func @_flash_kernel(%arg0: i32, %arg1: i32, %arg2: i32, %arg3: i32, %arg4: memref<1x1x2x16x8xf32, #tpu.memory_space<vmem>>, %arg5: memref<1x1x16x8xf32, #tpu.memory_space<vmem>>, %arg6: memref<1x1x16x8xf32, #tpu.memory_space<vmem>>, %arg7: memref<1x1x2x16x8xf32, #tpu.memory_space<vmem>>, %arg8: memref<32x1xf32, #tpu.memory_space<vmem>>, %arg9: memref<32x1xf32, #tpu.memory_space<vmem>>, %arg10: memref<32x8xf32, #tpu.memory_space<vmem>>) attributes {dimension_semantics = [#tpu.dimension_semantics<parallel>, #tpu.dimension_semantics<parallel>, #tpu.dimension_semantics<parallel>, #tpu.dimension_semantics<arbitrary>], iteration_bounds = array<i64: 2, 2, 1, 1>, scalar_prefetch = 0 : i64, scratch_operands = 3 : i64, tpu.core_type = #tpu.core_type<tc>, window_params = [{transform_indices = @transform_0, window_bounds = array<i64: 1, 1, 2, 16, 8>}, {transform_indices = @transform_1, window_bounds = array<i64: 1, 1, 16, 8>}, {transform_indices = @transform_2, window_bounds = array<i64: 1, 1, 16, 8>}, {transform_indices = @transform_3, window_bounds = array<i64: 1, 1, 2, 16, 8>}]} {
    %c16_i32 = arith.constant 16 : i32
    %0 = arith.muli %arg2, %c16_i32 : i32
    %c16_i32_0 = arith.constant 16 : i32
    %1 = arith.muli %arg3, %c16_i32_0 : i32
    %c0_i32 = arith.constant 0 : i32
    %2 = arith.cmpi eq, %arg3, %c0_i32 : i32
    %3 = arith.extui %2 : i1 to i32
    %c0_i32_1 = arith.constant 0 : i32
    %4 = arith.cmpi ne, %3, %c0_i32_1 : i32
    scf.if %4 {
      %cst = arith.constant -2.38197633E+38 : f32
      %22 = vector.broadcast %cst : f32 to vector<32x1xf32>
      %c0 = arith.constant 0 : index
      %c0_11 = arith.constant 0 : index
      %23 = vector.load %arg8[%c0, %c0_11] : memref<32x1xf32, #tpu.memory_space<vmem>>, vector<32x1xf32>
      tpu.vector_store %arg8[%c0, %c0_11], %22 {strides = array<i32>} : memref<32x1xf32, #tpu.memory_space<vmem>>, vector<32x1xf32>,
      %cst_12 = arith.constant 0.000000e+00 : f32
      %24 = vector.broadcast %cst_12 : f32 to vector<32x1xf32>
      %c0_13 = arith.constant 0 : index
      %c0_14 = arith.constant 0 : index
      %25 = vector.load %arg9[%c0_13, %c0_14] : memref<32x1xf32, #tpu.memory_space<vmem>>, vector<32x1xf32>
      tpu.vector_store %arg9[%c0_13, %c0_14], %24 {strides = array<i32>} : memref<32x1xf32, #tpu.memory_space<vmem>>, vector<32x1xf32>,
      %cst_15 = arith.constant 0.000000e+00 : f32
      %26 = vector.broadcast %cst_15 : f32 to vector<32x8xf32>
      %c0_16 = arith.constant 0 : index
      %c0_17 = arith.constant 0 : index
      %27 = vector.load %arg10[%c0_16, %c0_17] : memref<32x8xf32, #tpu.memory_space<vmem>>, vector<32x8xf32>
      tpu.vector_store %arg10[%c0_16, %c0_17], %26 {strides = array<i32>} : memref<32x8xf32, #tpu.memory_space<vmem>>, vector<32x8xf32>,
    } else {
    }
    %c16_i32_2 = arith.constant 16 : i32
    %5 = arith.addi %1, %c16_i32_2 : i32
    %c1_i32 = arith.constant 1 : i32
    %6 = arith.subi %5, %c1_i32 : i32
    %7 = arith.cmpi sle, %6, %0 : i32
    %c16_i32_3 = arith.constant 16 : i32
    %8 = arith.addi %0, %c16_i32_3 : i32
    %c1_i32_4 = arith.constant 1 : i32
    %9 = arith.subi %8, %c1_i32_4 : i32
    %10 = arith.cmpi sle, %1, %9 : i32
    %c16_i32_5 = arith.constant 16 : i32
    %11 = arith.addi %1, %c16_i32_5 : i32
    %c1_i32_6 = arith.constant 1 : i32
    %12 = arith.subi %11, %c1_i32_6 : i32
    %13 = arith.cmpi sgt, %12, %0 : i32
    %14 = arith.andi %10, %13 : i1
    %15 = arith.extui %7 : i1 to i32
    %c0_i32_7 = arith.constant 0 : i32
    %16 = arith.cmpi ne, %15, %c0_i32_7 : i32
    scf.if %16 {
      %c0 = arith.constant 0 : index
      %c0_11 = arith.constant 0 : index
      %c0_12 = arith.constant 0 : index
      %c0_13 = arith.constant 0 : index
      %c0_14 = arith.constant 0 : index
      %22 = vector.load %arg4[%c0, %c0_11, %c0_12, %c0_13, %c0_14] : memref<1x1x2x16x8xf32, #tpu.memory_space<vmem>>, vector<1x1x2x16x8xf32>
      %23 = vector.shape_cast %22 : vector<1x1x2x16x8xf32> to vector<2x16x8xf32>
      %24 = vector.shape_cast %23 : vector<2x16x8xf32> to vector<32x8xf32>
      %c0_15 = arith.constant 0 : index
      %c0_16 = arith.constant 0 : index
      %c0_17 = arith.constant 0 : index
      %c0_18 = arith.constant 0 : index
      %25 = vector.load %arg5[%c0_15, %c0_16, %c0_17, %c0_18] : memref<1x1x16x8xf32, #tpu.memory_space<vmem>>, vector<1x1x16x8xf32>
      %26 = vector.shape_cast %25 : vector<1x1x16x8xf32> to vector<16x8xf32>
      %cst = arith.constant 0.353553385 : f32
      %27 = vector.broadcast %cst : f32 to vector<16x8xf32>
      %28 = arith.mulf %26, %27 : vector<16x8xf32>
      %c0_19 = arith.constant 0 : index
      %c0_20 = arith.constant 0 : index
      %c0_21 = arith.constant 0 : index
      %c0_22 = arith.constant 0 : index
      %29 = vector.load %arg6[%c0_19, %c0_20, %c0_21, %c0_22] : memref<1x1x16x8xf32, #tpu.memory_space<vmem>>, vector<1x1x16x8xf32>
      %30 = vector.shape_cast %29 : vector<1x1x16x8xf32> to vector<16x8xf32>
      %cst_23 = arith.constant dense<0.000000e+00> : vector<32x16xf32>
      %31 = tpu.matmul %24, %28, %cst_23 {dimension_numbers = #tpu.dot_dimension_numbers<[1], [1], [0], [0], [0, 0, 1, 0], [], []>} : vector<32x8xf32>, vector<16x8xf32>, vector<32x16xf32> -> vector<32x16xf32>
      %c0_24 = arith.constant 0 : index
      %c0_25 = arith.constant 0 : index
      %32 = vector.load %arg8[%c0_24, %c0_25] : memref<32x1xf32, #tpu.memory_space<vmem>>, vector<32x1xf32>
      %cst_26 = arith.constant dense<0xFF800000> : vector<32xf32>
      %33 = vector.multi_reduction <maximumf>, %31, %cst_26 [1] : vector<32x16xf32> to vector<32xf32>
      %34 = vector.shape_cast %33 : vector<32xf32> to vector<32x1xf32>
      %35 = arith.maximumf %32, %34 : vector<32x1xf32>
      %36 = arith.subf %32, %35 : vector<32x1xf32>
      %37 = math.exp %36 : vector<32x1xf32>
      %38 = vector.broadcast %35 : vector<32x1xf32> to vector<32x16xf32>
      %39 = arith.subf %31, %38 : vector<32x16xf32>
      %40 = math.exp %39 : vector<32x16xf32>
      %c0_27 = arith.constant 0 : index
      %c0_28 = arith.constant 0 : index
      %41 = vector.load %arg9[%c0_27, %c0_28] : memref<32x1xf32, #tpu.memory_space<vmem>>, vector<32x1xf32>
      %42 = arith.mulf %37, %41 : vector<32x1xf32>
      %cst_29 = arith.constant dense<0.000000e+00> : vector<32xf32>
      %43 = vector.multi_reduction <add>, %40, %cst_29 [1] : vector<32x16xf32> to vector<32xf32>
      %44 = vector.shape_cast %43 : vector<32xf32> to vector<32x1xf32>
      %45 = arith.addf %42, %44 : vector<32x1xf32>
      %c0_30 = arith.constant 0 : index
      %c0_31 = arith.constant 0 : index
      %46 = vector.load %arg9[%c0_30, %c0_31] : memref<32x1xf32, #tpu.memory_space<vmem>>, vector<32x1xf32>
      tpu.vector_store %arg9[%c0_30, %c0_31], %45 {strides = array<i32>} : memref<32x1xf32, #tpu.memory_space<vmem>>, vector<32x1xf32>,
      %c0_32 = arith.constant 0 : index
      %c0_33 = arith.constant 0 : index
      %47 = vector.load %arg10[%c0_32, %c0_33] : memref<32x8xf32, #tpu.memory_space<vmem>>, vector<32x8xf32>
      %48 = vector.broadcast %37 : vector<32x1xf32> to vector<32x8xf32>
      %49 = arith.mulf %48, %47 : vector<32x8xf32>
      %cst_34 = arith.constant dense<0.000000e+00> : vector<32x8xf32>
      %50 = tpu.matmul %40, %30, %cst_34 {dimension_numbers = #tpu.dot_dimension_numbers<[1], [0], [0], [1], [0, 0, 1, 1], [], []>} : vector<32x16xf32>, vector<16x8xf32>, vector<32x8xf32> -> vector<32x8xf32>
      %51 = arith.addf %49, %50 : vector<32x8xf32>
      %c0_35 = arith.constant 0 : index
      %c0_36 = arith.constant 0 : index
      %52 = vector.load %arg10[%c0_35, %c0_36] : memref<32x8xf32, #tpu.memory_space<vmem>>, vector<32x8xf32>
      tpu.vector_store %arg10[%c0_35, %c0_36], %51 {strides = array<i32>} : memref<32x8xf32, #tpu.memory_space<vmem>>, vector<32x8xf32>,
      %c0_37 = arith.constant 0 : index
      %c0_38 = arith.constant 0 : index
      %53 = vector.load %arg8[%c0_37, %c0_38] : memref<32x1xf32, #tpu.memory_space<vmem>>, vector<32x1xf32>
      tpu.vector_store %arg8[%c0_37, %c0_38], %35 {strides = array<i32>} : memref<32x1xf32, #tpu.memory_space<vmem>>, vector<32x1xf32>,
    } else {
    }
    %17 = arith.extui %14 : i1 to i32
    %c0_i32_8 = arith.constant 0 : i32
    %18 = arith.cmpi ne, %17, %c0_i32_8 : i32
    scf.if %18 {
      %c0 = arith.constant 0 : index
      %c0_11 = arith.constant 0 : index
      %c0_12 = arith.constant 0 : index
      %c0_13 = arith.constant 0 : index
      %c0_14 = arith.constant 0 : index
      %22 = vector.load %arg4[%c0, %c0_11, %c0_12, %c0_13, %c0_14] : memref<1x1x2x16x8xf32, #tpu.memory_space<vmem>>, vector<1x1x2x16x8xf32>
      %23 = vector.shape_cast %22 : vector<1x1x2x16x8xf32> to vector<2x16x8xf32>
      %24 = vector.shape_cast %23 : vector<2x16x8xf32> to vector<32x8xf32>
      %c0_15 = arith.constant 0 : index
      %c0_16 = arith.constant 0 : index
      %c0_17 = arith.constant 0 : index
      %c0_18 = arith.constant 0 : index
      %25 = vector.load %arg5[%c0_15, %c0_16, %c0_17, %c0_18] : memref<1x1x16x8xf32, #tpu.memory_space<vmem>>, vector<1x1x16x8xf32>
      %26 = vector.shape_cast %25 : vector<1x1x16x8xf32> to vector<16x8xf32>
      %cst = arith.constant 0.353553385 : f32
      %27 = vector.broadcast %cst : f32 to vector<16x8xf32>
      %28 = arith.mulf %26, %27 : vector<16x8xf32>
      %c0_19 = arith.constant 0 : index
      %c0_20 = arith.constant 0 : index
      %c0_21 = arith.constant 0 : index
      %c0_22 = arith.constant 0 : index
      %29 = vector.load %arg6[%c0_19, %c0_20, %c0_21, %c0_22] : memref<1x1x16x8xf32, #tpu.memory_space<vmem>>, vector<1x1x16x8xf32>
      %30 = vector.shape_cast %29 : vector<1x1x16x8xf32> to vector<16x8xf32>
      %cst_23 = arith.constant dense<0.000000e+00> : vector<32x16xf32>
      %31 = tpu.matmul %24, %28, %cst_23 {dimension_numbers = #tpu.dot_dimension_numbers<[1], [1], [0], [0], [0, 0, 1, 0], [], []>} : vector<32x8xf32>, vector<16x8xf32>, vector<32x16xf32> -> vector<32x16xf32>
      %32 = tpu.iota {dimensions = array<i32: 0>} : vector<32x16xi32>
      %c16_i32_24 = arith.constant 16 : i32
      %c0_i32_25 = arith.constant 0 : i32
      %33 = arith.cmpi eq, %c16_i32_24, %c0_i32_25 : i32
      %c1_i32_26 = arith.constant 1 : i32
      %34 = arith.select %33, %c1_i32_26, %c16_i32_24 : i32
      %35 = vector.broadcast %34 : i32 to vector<32x16xi32>
      %36 = arith.remsi %32, %35 : vector<32x16xi32>
      %c0_i32_27 = arith.constant 0 : i32
      %37 = vector.broadcast %c0_i32_27 : i32 to vector<32x16xi32>
      %38 = arith.cmpi ne, %36, %37 : vector<32x16xi32>
      %c0_i32_28 = arith.constant 0 : i32
      %39 = vector.broadcast %c0_i32_28 : i32 to vector<32x16xi32>
      %40 = arith.cmpi slt, %36, %39 : vector<32x16xi32>
      %c0_i32_29 = arith.constant 0 : i32
      %41 = arith.cmpi slt, %34, %c0_i32_29 : i32
      %42 = vector.broadcast %41 : i1 to vector<32x16xi1>
      %43 = vector.broadcast %42 : vector<32x16xi1> to vector<32x16xi1>
      %44 = arith.xori %40, %43 : vector<32x16xi1>
      %45 = arith.andi %44, %38 : vector<32x16xi1>
      %46 = vector.broadcast %34 : i32 to vector<32x16xi32>
      %47 = arith.addi %36, %46 : vector<32x16xi32>
      %48 = arith.select %45, %47, %36 : vector<32x16xi1>, vector<32x16xi32>
      %49 = vector.broadcast %0 : i32 to vector<32x16xi32>
      %50 = arith.addi %49, %48 : vector<32x16xi32>
      %51 = tpu.iota {dimensions = array<i32: 1>} : vector<32x16xi32>
      %52 = vector.broadcast %1 : i32 to vector<32x16xi32>
      %53 = arith.addi %52, %51 : vector<32x16xi32>
      %54 = arith.cmpi sle, %53, %50 : vector<32x16xi32>
      %cst_30 = arith.constant -2.38197633E+38 : f32
      %55 = vector.broadcast %cst_30 : f32 to vector<32x16xf32>
      %56 = arith.select %54, %31, %55 : vector<32x16xi1>, vector<32x16xf32>
      %c0_31 = arith.constant 0 : index
      %c0_32 = arith.constant 0 : index
      %57 = vector.load %arg8[%c0_31, %c0_32] : memref<32x1xf32, #tpu.memory_space<vmem>>, vector<32x1xf32>
      %cst_33 = arith.constant dense<0xFF800000> : vector<32xf32>
      %58 = vector.multi_reduction <maximumf>, %56, %cst_33 [1] : vector<32x16xf32> to vector<32xf32>
      %59 = vector.shape_cast %58 : vector<32xf32> to vector<32x1xf32>
      %60 = arith.maximumf %57, %59 : vector<32x1xf32>
      %61 = arith.subf %57, %60 : vector<32x1xf32>
      %62 = math.exp %61 : vector<32x1xf32>
      %63 = vector.broadcast %60 : vector<32x1xf32> to vector<32x16xf32>
      %64 = arith.subf %56, %63 : vector<32x16xf32>
      %65 = math.exp %64 : vector<32x16xf32>
      %c0_34 = arith.constant 0 : index
      %c0_35 = arith.constant 0 : index
      %66 = vector.load %arg9[%c0_34, %c0_35] : memref<32x1xf32, #tpu.memory_space<vmem>>, vector<32x1xf32>
      %67 = arith.mulf %62, %66 : vector<32x1xf32>
      %cst_36 = arith.constant dense<0.000000e+00> : vector<32xf32>
      %68 = vector.multi_reduction <add>, %65, %cst_36 [1] : vector<32x16xf32> to vector<32xf32>
      %69 = vector.shape_cast %68 : vector<32xf32> to vector<32x1xf32>
      %70 = arith.addf %67, %69 : vector<32x1xf32>
      %c0_37 = arith.constant 0 : index
      %c0_38 = arith.constant 0 : index
      %71 = vector.load %arg9[%c0_37, %c0_38] : memref<32x1xf32, #tpu.memory_space<vmem>>, vector<32x1xf32>
      tpu.vector_store %arg9[%c0_37, %c0_38], %70 {strides = array<i32>} : memref<32x1xf32, #tpu.memory_space<vmem>>, vector<32x1xf32>,
      %c0_39 = arith.constant 0 : index
      %c0_40 = arith.constant 0 : index
      %72 = vector.load %arg10[%c0_39, %c0_40] : memref<32x8xf32, #tpu.memory_space<vmem>>, vector<32x8xf32>
      %73 = vector.broadcast %62 : vector<32x1xf32> to vector<32x8xf32>
      %74 = arith.mulf %73, %72 : vector<32x8xf32>
      %cst_41 = arith.constant dense<0.000000e+00> : vector<32x8xf32>
      %75 = tpu.matmul %65, %30, %cst_41 {dimension_numbers = #tpu.dot_dimension_numbers<[1], [0], [0], [1], [0, 0, 1, 1], [], []>} : vector<32x16xf32>, vector<16x8xf32>, vector<32x8xf32> -> vector<32x8xf32>
      %76 = arith.addf %74, %75 : vector<32x8xf32>
      %c0_42 = arith.constant 0 : index
      %c0_43 = arith.constant 0 : index
      %77 = vector.load %arg10[%c0_42, %c0_43] : memref<32x8xf32, #tpu.memory_space<vmem>>, vector<32x8xf32>
      tpu.vector_store %arg10[%c0_42, %c0_43], %76 {strides = array<i32>} : memref<32x8xf32, #tpu.memory_space<vmem>>, vector<32x8xf32>,
      %c0_44 = arith.constant 0 : index
      %c0_45 = arith.constant 0 : index
      %78 = vector.load %arg8[%c0_44, %c0_45] : memref<32x1xf32, #tpu.memory_space<vmem>>, vector<32x1xf32>
      tpu.vector_store %arg8[%c0_44, %c0_45], %60 {strides = array<i32>} : memref<32x1xf32, #tpu.memory_space<vmem>>, vector<32x1xf32>,
    } else {
    }
    %c0_i32_9 = arith.constant 0 : i32
    %19 = arith.cmpi eq, %arg3, %c0_i32_9 : i32
    %20 = arith.extui %19 : i1 to i32
    %c0_i32_10 = arith.constant 0 : i32
    %21 = arith.cmpi ne, %20, %c0_i32_10 : i32
    scf.if %21 {
      %c0 = arith.constant 0 : index
      %c0_11 = arith.constant 0 : index
      %22 = vector.load %arg9[%c0, %c0_11] : memref<32x1xf32, #tpu.memory_space<vmem>>, vector<32x1xf32>
      %23 = tpu.reciprocal %22 {approx = true} : vector<32x1xf32> -> vector<32x1xf32>
      %c0_12 = arith.constant 0 : index
      %c0_13 = arith.constant 0 : index
      %24 = vector.load %arg10[%c0_12, %c0_13] : memref<32x8xf32, #tpu.memory_space<vmem>>, vector<32x8xf32>
      %25 = vector.broadcast %23 : vector<32x1xf32> to vector<32x8xf32>
      %26 = arith.mulf %24, %25 : vector<32x8xf32>
      %27 = vector.shape_cast %26 : vector<32x8xf32> to vector<2x16x8xf32>
      %c0_14 = arith.constant 0 : index
      %c0_15 = arith.constant 0 : index
      %c0_16 = arith.constant 0 : index
      %c0_17 = arith.constant 0 : index
      %c0_18 = arith.constant 0 : index
      %28 = vector.load %arg7[%c0_14, %c0_15, %c0_16, %c0_17, %c0_18] : memref<1x1x2x16x8xf32, #tpu.memory_space<vmem>>, vector<1x1x2x16x8xf32>
      %29 = vector.shape_cast %28 : vector<1x1x2x16x8xf32> to vector<2x16x8xf32>
      %30 = vector.shape_cast %27 : vector<2x16x8xf32> to vector<1x1x2x16x8xf32>
      tpu.vector_store %arg7[%c0_14, %c0_15, %c0_16, %c0_17, %c0_18], %30 {strides = array<i32>} : memref<1x1x2x16x8xf32, #tpu.memory_space<vmem>>, vector<1x1x2x16x8xf32>,
    } else {
    }
    return
  }
  func.func @transform_0(%arg0: i32, %arg1: i32, %arg2: i32, %arg3: i32) -> (i32, i32, i32, i32, i32) {
    %c0_i32 = arith.constant 0 : i32
    %c0_i32_0 = arith.constant 0 : i32
    %c0_i32_1 = arith.constant 0 : i32
    return %arg0, %arg1, %c0_i32, %arg2, %c0_i32_0 : i32, i32, i32, i32, i32
  }
  func.func @transform_1(%arg0: i32, %arg1: i32, %arg2: i32, %arg3: i32) -> (i32, i32, i32, i32) {
    %0 = arith.minsi %arg2, %arg3 : i32
    %c0_i32 = arith.constant 0 : i32
    %c0_i32_0 = arith.constant 0 : i32
    return %arg0, %arg1, %0, %c0_i32 : i32, i32, i32, i32
  }
  func.func @transform_2(%arg0: i32, %arg1: i32, %arg2: i32, %arg3: i32) -> (i32, i32, i32, i32) {
    %0 = arith.minsi %arg2, %arg3 : i32
    %c0_i32 = arith.constant 0 : i32
    %c0_i32_0 = arith.constant 0 : i32
    return %arg0, %arg1, %0, %c0_i32 : i32, i32, i32, i32
  }
  func.func @transform_3(%arg0: i32, %arg1: i32, %arg2: i32, %arg3: i32) -> (i32, i32, i32, i32, i32) {
    %c0_i32 = arith.constant 0 : i32
    %c0_i32_0 = arith.constant 0 : i32
    %c0_i32_1 = arith.constant 0 : i32
    return %arg0, %arg1, %c0_i32, %arg2, %c0_i32_0 : i32, i32, i32, i32, i32
  }
}

module attributes {stable_mosaic.version = 11 : i64} {
  func.func @_linear_kernel(%arg0: i32, %arg1: i32, %arg2: i32, %arg3: memref<32x32xf32, #tpu.memory_space<vmem>>, %arg4: memref<32x32xf32, #tpu.memory_space<vmem>>, %arg5: memref<32x32xf32, #tpu.memory_space<vmem>>, %arg6: memref<32x32xf32, #tpu.memory_space<vmem>>) attributes {dimension_semantics = [#tpu.dimension_semantics<parallel>, #tpu.dimension_semantics<parallel>, #tpu.dimension_semantics<arbitrary>], iteration_bounds = array<i64: 1, 1, 1>, scalar_prefetch = 0 : i64, scratch_operands = 1 : i64, tpu.core_type = #tpu.core_type<tc>, window_params = [{transform_indices = @transform_0, window_bounds = array<i64: 32, 32>}, {transform_indices = @transform_1, window_bounds = array<i64: 32, 32>}, {transform_indices = @transform_2, window_bounds = array<i64: 32, 32>}]} {
    %c0_i32 = arith.constant 0 : i32
    %0 = arith.cmpi eq, %arg2, %c0_i32 : i32
    %1 = arith.extui %0 : i1 to i32
    %c0_i32_0 = arith.constant 0 : i32
    %2 = arith.cmpi ne, %1, %c0_i32_0 : i32
    scf.if %2 {
      %cst_10 = arith.constant 0.000000e+00 : f32
      %12 = vector.broadcast %cst_10 : f32 to vector<32x32xf32>
      %c0_11 = arith.constant 0 : index
      %c0_12 = arith.constant 0 : index
      %13 = vector.load %arg6[%c0_11, %c0_12] : memref<32x32xf32, #tpu.memory_space<vmem>>, vector<32x32xf32>
      tpu.vector_store %arg6[%c0_11, %c0_12], %12 {strides = array<i32>} : memref<32x32xf32, #tpu.memory_space<vmem>>, vector<32x32xf32>,
    } else {
    }
    %c0 = arith.constant 0 : index
    %c0_1 = arith.constant 0 : index
    %3 = vector.load %arg6[%c0, %c0_1] : memref<32x32xf32, #tpu.memory_space<vmem>>, vector<32x32xf32>
    %c0_2 = arith.constant 0 : index
    %c0_3 = arith.constant 0 : index
    %4 = vector.load %arg3[%c0_2, %c0_3] : memref<32x32xf32, #tpu.memory_space<vmem>>, vector<32x32xf32>
    %c0_4 = arith.constant 0 : index
    %c0_5 = arith.constant 0 : index
    %5 = vector.load %arg4[%c0_4, %c0_5] : memref<32x32xf32, #tpu.memory_space<vmem>>, vector<32x32xf32>
    %cst = arith.constant dense<0.000000e+00> : vector<32x32xf32>
    %6 = tpu.matmul %4, %5, %cst {dimension_numbers = #tpu.dot_dimension_numbers<[1], [0], [0], [1], [0, 0, 1, 1], [], []>} : vector<32x32xf32>, vector<32x32xf32>, vector<32x32xf32> -> vector<32x32xf32>
    %7 = arith.addf %3, %6 : vector<32x32xf32>
    %c0_6 = arith.constant 0 : index
    %c0_7 = arith.constant 0 : index
    %8 = vector.load %arg6[%c0_6, %c0_7] : memref<32x32xf32, #tpu.memory_space<vmem>>, vector<32x32xf32>
    tpu.vector_store %arg6[%c0_6, %c0_7], %7 {strides = array<i32>} : memref<32x32xf32, #tpu.memory_space<vmem>>, vector<32x32xf32>,
    %c0_i32_8 = arith.constant 0 : i32
    %9 = arith.cmpi eq, %arg2, %c0_i32_8 : i32
    %10 = arith.extui %9 : i1 to i32
    %c0_i32_9 = arith.constant 0 : i32
    %11 = arith.cmpi ne, %10, %c0_i32_9 : i32
    scf.if %11 {
      %c0_10 = arith.constant 0 : index
      %c0_11 = arith.constant 0 : index
      %12 = vector.load %arg6[%c0_10, %c0_11] : memref<32x32xf32, #tpu.memory_space<vmem>>, vector<32x32xf32>
      %c0_12 = arith.constant 0 : index
      %c0_13 = arith.constant 0 : index
      %13 = vector.load %arg5[%c0_12, %c0_13] : memref<32x32xf32, #tpu.memory_space<vmem>>, vector<32x32xf32>
      tpu.vector_store %arg5[%c0_12, %c0_13], %12 {strides = array<i32>} : memref<32x32xf32, #tpu.memory_space<vmem>>, vector<32x32xf32>,
    } else {
    }
    return
  }
  func.func @transform_0(%arg0: i32, %arg1: i32, %arg2: i32) -> (i32, i32) {
    %c0_i32 = arith.constant 0 : i32
    return %arg0, %arg2 : i32, i32
  }
  func.func @transform_1(%arg0: i32, %arg1: i32, %arg2: i32) -> (i32, i32) {
    %c0_i32 = arith.constant 0 : i32
    return %arg2, %arg1 : i32, i32
  }
  func.func @transform_2(%arg0: i32, %arg1: i32, %arg2: i32) -> (i32, i32) {
    %c0_i32 = arith.constant 0 : i32
    return %arg0, %arg1 : i32, i32
  }
}

</mosaic_0001>

<llo_original>
// kernel: attention_forward.3
$region0: #{attention_forward.3}
  #allocation0 [shape = 'u32[]', space=smem, size = 0x4, offset = 0x4, fixed_abs, tag = 'smem constant byte address 0x4 - core index']
  #allocation1 [shape = 'u32[144,128]{1,0:T(1,128)}', space=vmem, size = 0x12000, scoped, tag = 'internal scratch']
  #allocation2 [shape = 'f32[32,64]{1,0:T(8,128)}', space=vmem, size = 0x4000, scoped, tag = 'scratch operand']
  %s0 = inlined_call_operand.vmem [shape: f32[32,32], index: 0, kind: input, shape index: {}]
  %s1 = inlined_call_operand.hbm [shape: f32[32,64], index: 1, kind: input, shape index: {}]
  %s2 = inlined_call_operand.vmem [shape: f32[32,64], index: 2, kind: output, shape index: {}]
  %s3 = sld [smem:[#allocation0]]
  $region30: #{attention_forward.3} parent=0
    _
  %s5 = ssub.s32 1, %s3
  %s6 = scalar_select 0, %s5, %s3
  $region1: #{attention_forward.3} parent=0
    #allocation3 [shape = 'u8[16384]{0}', space=vmem, size = 0x4000, scoped, tag = 'input window, operand 1, single buffered']
    #allocation4 [shape = 's32[1]{0}', space=sflag, size = 0x4, scoped, tag = 'scoped memory for attention_forward.3']
    %7 = vsyncpa [#allocation4], 0
    // Predicated region
    $region2: #{attention_forward.3} parent=1 // pred_check
      _
    $region3: #{attention_forward.3} parent=1 // pred_check_branch
      %9 = sbr.rel (0) target = $region5
    $region4: #{attention_forward.3} parent=1 // pred_region
      _
    $region5: #{attention_forward.3} parent=1 // pred_fallthru
      _
    // Predicated region
    $region6: #{attention_forward.3} parent=1 // pred_check
      _
    $region7: #{attention_forward.3} parent=1 // pred_check_branch
      %11 = sbr.rel (0) target = $region9
    $region8: #{attention_forward.3} parent=1 // pred_region
      %s13 = ssub.s32 512, 512
      %14 = vsyncadd [#allocation4], %s13
      %s15 = sshll.u32 [#allocation3], 4
      %s16 = int_to_ptr.vmem [resolvable:$true] %s15
      %21 = dma.hbm_to_vmem [thread:$0]  %s1, 512, %s16, [#allocation4], 128, 128, 8
    $region9: #{attention_forward.3} parent=1 // pred_fallthru
      _
    // Predicated region
    $region10: #{attention_forward.3} parent=1 // pred_check
      _
    $region11: #{attention_forward.3} parent=1 // pred_check_branch
      %23 = sbr.rel (0) target = $region13
    $region12: #{attention_forward.3} parent=1 // pred_region
      %24 = dma.done [#allocation4], 512
    $region13: #{attention_forward.3} parent=1 // pred_fallthru
      _
    %p25 = scmp.eq.s32.totalorder 0, 0
    // Predicated region
    $region14: #{attention_forward.3} parent=1 // pred_check
      %p26 = pneg %p25
    $region15: #{attention_forward.3} parent=1 // pred_check_branch
      %28 = sbr.rel (%p26) target = $region17
    $region16: #{attention_forward.3} parent=1 // pred_region
      %vm29 = vcmask 523264
      %30 = vst.msk [vmem:[#allocation2] sm:$0xff] %vm29, 0.0
      %31 = vst.msk [vmem:[#allocation2 + $0x8] sm:$0xff] %vm29, 0.0
      %32 = vst.msk [vmem:[#allocation2 + $0x10] sm:$0xff] %vm29, 0.0
      %33 = vst.msk [vmem:[#allocation2 + $0x18] sm:$0xff] %vm29, 0.0
    $region17: #{attention_forward.3} parent=1 // pred_fallthru
      _
    %v34 = vld [vmem:[#allocation2] sm:$0xff]
    %v35 = vld [vmem:[#allocation2 + $0x8] sm:$0xff]
    %v36 = vld [vmem:[#allocation2 + $0x10] sm:$0xff]
    %v37 = vld [vmem:[#allocation2 + $0x18] sm:$0xff]
    %v38 = vld [vmem:[%s0] sm:$0xff]
    %v39 = vld [vmem:[%s0 + $0x8] sm:$0xff]
    %v40 = vld [vmem:[%s0 + $0x10] sm:$0xff]
    %v41 = vld [vmem:[%s0 + $0x18] sm:$0xff]
    %v42 = vld [vmem:[#allocation3] sm:$0xff]
    %v43 = vld [vmem:[#allocation3 + $0x8] sm:$0xff]
    %v44 = vld [vmem:[#allocation3 + $0x10] sm:$0xff]
    %v45 = vld [vmem:[#allocation3 + $0x18] sm:$0xff]
    %vm46 = vcmask 261120
    %v48 = vsel %vm46, %v38, 0
    %v51 = vsel %vm46, %v39, 0
    %v54 = vsel %vm46, %v40, 0
    %v57 = vsel %vm46, %v41, 0
    %59 = vmatprep.subr.mxu0 0.0
    %60 = vmatpush1.msra.mxu0 %v42
    %61 = vmatprep.subr.mxu0 0.0
    %62 = vmatpush1.msra.mxu0 %v43
    %63 = vmatprep.subr.mxu0 0.0
    %64 = vmatpush1.msra.mxu0 %v44
    %65 = vmatprep.subr.mxu0 0.0
    %66 = vmatpush1.msra.mxu0 %v45
    %67 = vmatprep.subr.mxu0 0.0
    %68 = vmatpush1.msra.mxu0 0.0
    %69 = vmatprep.subr.mxu0 0.0
    %70 = vmatpush1.msra.mxu0 0.0
    %71 = vmatprep.subr.mxu0 0.0
    %72 = vmatpush1.msra.mxu0 0.0
    %73 = vmatprep.subr.mxu0 0.0
    %74 = vmatpush1.msra.mxu0 0.0
    %75 = vmatprep.subr.mxu0 0.0
    %76 = vmatpush1.msra.mxu0 0.0
    %77 = vmatprep.subr.mxu0 0.0
    %78 = vmatpush1.msra.mxu0 0.0
    %79 = vmatprep.subr.mxu0 0.0
    %80 = vmatpush1.msra.mxu0 0.0
    %81 = vmatprep.subr.mxu0 0.0
    %82 = vmatpush1.msra.mxu0 0.0
    %83 = vmatprep.subr.mxu0 0.0
    %84 = vmatpush1.msra.mxu0 0.0
    %85 = vmatprep.subr.mxu0 0.0
    %86 = vmatpush1.msra.mxu0 0.0
    %87 = vmatprep.subr.mxu0 0.0
    %88 = vmatpush1.msra.mxu0 0.0
    %89 = vmatprep.subr.mxu0 0.0
    %90 = vmatpush1.msra.mxu0 0.0
    %91 = vmatprep.subr.mxu0 0.0
    %92 = vmatpush1.msra.mxu0 0.0
    %93 = vmatprep.subr.mxu0 0.0
    %94 = vmatpush1.msra.mxu0 0.0
    %95 = vmatprep.subr.mxu0 0.0
    %96 = vmatpush1.msra.mxu0 0.0
    %97 = vmatprep.subr.mxu0 0.0
    %98 = vmatpush1.msra.mxu0 0.0
    %99 = vmatprep.subr.mxu0 0.0
    %100 = vmatpush1.msra.mxu0 0.0
    %101 = vmatprep.subr.mxu0 0.0
    %102 = vmatpush1.msra.mxu0 0.0
    %103 = vmatprep.subr.mxu0 0.0
    %104 = vmatpush1.msra.mxu0 0.0
    %105 = vmatprep.subr.mxu0 0.0
    %106 = vmatpush1.msra.mxu0 0.0
    %107 = vmatprep.subr.mxu0 0.0
    %108 = vmatpush1.msra.mxu0 0.0
    %109 = vmatprep.subr.mxu0 0.0
    %110 = vmatpush1.msra.mxu0 0.0
    %111 = vmatprep.subr.mxu0 0.0
    %112 = vmatpush1.msra.mxu0 0.0
    %113 = vmatprep.subr.mxu0 0.0
    %114 = vmatpush1.msra.mxu0 0.0
    %115 = vmatprep.subr.mxu0 0.0
    %116 = vmatpush1.msra.mxu0 0.0
    %117 = vmatprep.subr.mxu0 0.0
    %118 = vmatpush1.msra.mxu0 0.0
    %119 = vmatprep.subr.mxu0 0.0
    %120 = vmatpush1.msra.mxu0 0.0
    %121 = vmatprep.subr.mxu0 0.0
    %122 = vmatpush1.msra.mxu0 0.0
    %123 = vmatprep.mubr.f32.mxu0 0.0
    %124 = vmatmul.mubr.f32.gmra.mrb[0].mxu0 %v48
    %v125 = vpop.f32.mrb[0].mxu0
    %v126 = vadd.f32 0.0, %v125
    %v127 = vpop.f32.mrb[0].mxu0
    %128 = vmatprep.mubr.f32.mxu0 0.0
    %129 = vmatmul.mubr.f32.gmra.mrb[0].mxu0 %v51
    %v130 = vpop.f32.mrb[0].mxu0
    %v131 = vadd.f32 0.0, %v130
    %v132 = vpop.f32.mrb[0].mxu0
    %133 = vmatprep.mubr.f32.mxu0 0.0
    %134 = vmatmul.mubr.f32.gmra.mrb[0].mxu0 %v54
    %v135 = vpop.f32.mrb[0].mxu0
    %v136 = vadd.f32 0.0, %v135
    %v137 = vpop.f32.mrb[0].mxu0
    %138 = vmatprep.mubr.f32.mxu0 0.0
    %139 = vmatmul.mubr.f32.gmra.mrb[0].mxu0 %v57
    %v140 = vpop.f32.mrb[0].mxu0
    %v141 = vadd.f32 0.0, %v140
    %v142 = vpop.f32.mrb[0].mxu0
    %143 = vdwg.mxu0
    %v144 = vadd.f32 %v34, %v126
    %v145 = vadd.f32 %v35, %v131
    %v146 = vadd.f32 %v36, %v136
    %v147 = vadd.f32 %v37, %v141
    %vm148 = vcmask 523264
    %149 = vst.msk [vmem:[#allocation2] sm:$0xff] %vm148, %v144
    %150 = vst.msk [vmem:[#allocation2 + $0x8] sm:$0xff] %vm148, %v145
    %151 = vst.msk [vmem:[#allocation2 + $0x10] sm:$0xff] %vm148, %v146
    %152 = vst.msk [vmem:[#allocation2 + $0x18] sm:$0xff] %vm148, %v147
    // Predicated region
    $region18: #{attention_forward.3} parent=1 // pred_check
      %p153 = pneg %p25
    $region19: #{attention_forward.3} parent=1 // pred_check_branch
      %155 = sbr.rel (%p153) target = $region21
    $region20: #{attention_forward.3} parent=1 // pred_region
      %v156 = vld [vmem:[#allocation2] sm:$0xff]
      %v157 = vld [vmem:[#allocation2 + $0x8] sm:$0xff]
      %v158 = vld [vmem:[#allocation2 + $0x10] sm:$0xff]
      %v159 = vld [vmem:[#allocation2 + $0x18] sm:$0xff]
      %160 = vst.msk [vmem:[%s2] sm:$0xff] %vm148, %v156
      %161 = vst.msk [vmem:[%s2 + $0x8] sm:$0xff] %vm148, %v157
      %162 = vst.msk [vmem:[%s2 + $0x10] sm:$0xff] %vm148, %v158
      %163 = vst.msk [vmem:[%s2 + $0x18] sm:$0xff] %vm148, %v159
    $region21: #{attention_forward.3} parent=1 // pred_fallthru
      _
    // Predicated region
    $region22: #{attention_forward.3} parent=1 // pred_check
      _
    $region23: #{attention_forward.3} parent=1 // pred_check_branch
      %165 = sbr.rel (0) target = $region25
    $region24: #{attention_forward.3} parent=1 // pred_region
      _
    $region25: #{attention_forward.3} parent=1 // pred_fallthru
      _
    // Predicated region
    $region26: #{attention_forward.3} parent=1 // pred_check
      _
    $region27: #{attention_forward.3} parent=1 // pred_check_branch
      %167 = sbr.rel (0) target = $region29
    $region28: #{attention_forward.3} parent=1 // pred_region
      _
    $region29: #{attention_forward.3} parent=1 // pred_fallthru
      _
    %168 = vsyncpa [#allocation4], 1

// kernel: attention_forward.5
$region0: #{attention_forward.5}
  #allocation0 [shape = 'u32[]', space=smem, size = 0x4, offset = 0x4, fixed_abs, tag = 'smem constant byte address 0x4 - core index']
  #allocation1 [shape = 'u32[144,128]{1,0:T(1,128)}', space=vmem, size = 0x12000, scoped, tag = 'internal scratch']
  #allocation2 [shape = 'f32[32,32]{1,0:T(8,128)}', space=vmem, size = 0x4000, scoped, tag = 'scratch operand']
  %s0 = inlined_call_operand.vmem [shape: f32[32,32], index: 0, kind: input, shape index: {}]
  %s1 = inlined_call_operand.vmem [shape: f32[32,32], index: 1, kind: input, shape index: {}]
  %s2 = inlined_call_operand.hbm [shape: f32[32,32], index: 2, kind: output, shape index: {}]
  %s3 = sld [smem:[#allocation0]]
  $region26: #{attention_forward.5} parent=0
    _
  %s5 = ssub.s32 1, %s3
  %s6 = scalar_select 0, %s5, %s3
  $region1: #{attention_forward.5} parent=0
    #allocation3 [shape = 'u8[16384]{0}', space=vmem, size = 0x4000, scoped, tag = 'output window, operand 0, single buffered']
    #allocation4 [shape = 's32[1]{0}', space=sflag, size = 0x4, scoped, tag = 'scoped memory for attention_forward.5']
    %7 = vsyncpa [#allocation4], 0
    // Predicated region
    $region2: #{attention_forward.5} parent=1 // pred_check
      _
    $region3: #{attention_forward.5} parent=1 // pred_check_branch
      %9 = sbr.rel (0) target = $region5
    $region4: #{attention_forward.5} parent=1 // pred_region
      _
    $region5: #{attention_forward.5} parent=1 // pred_fallthru
      _
    // Predicated region
    $region6: #{attention_forward.5} parent=1 // pred_check
      _
    $region7: #{attention_forward.5} parent=1 // pred_check_branch
      %11 = sbr.rel (0) target = $region9
    $region8: #{attention_forward.5} parent=1 // pred_region
      _
    $region9: #{attention_forward.5} parent=1 // pred_fallthru
      _
    %p12 = scmp.eq.s32.totalorder 0, 0
    // Predicated region
    $region10: #{attention_forward.5} parent=1 // pred_check
      %p13 = pneg %p12
    $region11: #{attention_forward.5} parent=1 // pred_check_branch
      %15 = sbr.rel (%p13) target = $region13
    $region12: #{attention_forward.5} parent=1 // pred_region
      %vm16 = vcmask 261120
      %17 = vst.msk [vmem:[#allocation2] sm:$0xff] %vm16, 0.0
      %18 = vst.msk [vmem:[#allocation2 + $0x8] sm:$0xff] %vm16, 0.0
      %19 = vst.msk [vmem:[#allocation2 + $0x10] sm:$0xff] %vm16, 0.0
      %20 = vst.msk [vmem:[#allocation2 + $0x18] sm:$0xff] %vm16, 0.0
    $region13: #{attention_forward.5} parent=1 // pred_fallthru
      _
    %v21 = vld [vmem:[#allocation2] sm:$0xff]
    %v22 = vld [vmem:[#allocation2 + $0x8] sm:$0xff]
    %v23 = vld [vmem:[#allocation2 + $0x10] sm:$0xff]
    %v24 = vld [vmem:[#allocation2 + $0x18] sm:$0xff]
    %v25 = vld [vmem:[%s0] sm:$0xff]
    %v26 = vld [vmem:[%s0 + $0x8] sm:$0xff]
    %v27 = vld [vmem:[%s0 + $0x10] sm:$0xff]
    %v28 = vld [vmem:[%s0 + $0x18] sm:$0xff]
    %v29 = vld [vmem:[%s1] sm:$0xff]
    %v30 = vld [vmem:[%s1 + $0x8] sm:$0xff]
    %v31 = vld [vmem:[%s1 + $0x10] sm:$0xff]
    %v32 = vld [vmem:[%s1 + $0x18] sm:$0xff]
    %vm33 = vcmask 261120
    %v35 = vsel %vm33, %v25, 0
    %v38 = vsel %vm33, %v26, 0
    %v41 = vsel %vm33, %v27, 0
    %v44 = vsel %vm33, %v28, 0
    %46 = vmatprep.subr.mxu0 0.0
    %47 = vmatpush1.msra.mxu0 %v29
    %48 = vmatprep.subr.mxu0 0.0
    %49 = vmatpush1.msra.mxu0 %v30
    %50 = vmatprep.subr.mxu0 0.0
    %51 = vmatpush1.msra.mxu0 %v31
    %52 = vmatprep.subr.mxu0 0.0
    %53 = vmatpush1.msra.mxu0 %v32
    %54 = vmatprep.subr.mxu0 0.0
    %55 = vmatpush1.msra.mxu0 0.0
    %56 = vmatprep.subr.mxu0 0.0
    %57 = vmatpush1.msra.mxu0 0.0
    %58 = vmatprep.subr.mxu0 0.0
    %59 = vmatpush1.msra.mxu0 0.0
    %60 = vmatprep.subr.mxu0 0.0
    %61 = vmatpush1.msra.mxu0 0.0
    %62 = vmatprep.subr.mxu0 0.0
    %63 = vmatpush1.msra.mxu0 0.0
    %64 = vmatprep.subr.mxu0 0.0
    %65 = vmatpush1.msra.mxu0 0.0
    %66 = vmatprep.subr.mxu0 0.0
    %67 = vmatpush1.msra.mxu0 0.0
    %68 = vmatprep.subr.mxu0 0.0
    %69 = vmatpush1.msra.mxu0 0.0
    %70 = vmatprep.subr.mxu0 0.0
    %71 = vmatpush1.msra.mxu0 0.0
    %72 = vmatprep.subr.mxu0 0.0
    %73 = vmatpush1.msra.mxu0 0.0
    %74 = vmatprep.subr.mxu0 0.0
    %75 = vmatpush1.msra.mxu0 0.0
    %76 = vmatprep.subr.mxu0 0.0
    %77 = vmatpush1.msra.mxu0 0.0
    %78 = vmatprep.subr.mxu0 0.0
    %79 = vmatpush1.msra.mxu0 0.0
    %80 = vmatprep.subr.mxu0 0.0
    %81 = vmatpush1.msra.mxu0 0.0
    %82 = vmatprep.subr.mxu0 0.0
    %83 = vmatpush1.msra.mxu0 0.0
    %84 = vmatprep.subr.mxu0 0.0
    %85 = vmatpush1.msra.mxu0 0.0
    %86 = vmatprep.subr.mxu0 0.0
    %87 = vmatpush1.msra.mxu0 0.0
    %88 = vmatprep.subr.mxu0 0.0
    %89 = vmatpush1.msra.mxu0 0.0
    %90 = vmatprep.subr.mxu0 0.0
    %91 = vmatpush1.msra.mxu0 0.0
    %92 = vmatprep.subr.mxu0 0.0
    %93 = vmatpush1.msra.mxu0 0.0
    %94 = vmatprep.subr.mxu0 0.0
    %95 = vmatpush1.msra.mxu0 0.0
    %96 = vmatprep.subr.mxu0 0.0
    %97 = vmatpush1.msra.mxu0 0.0
    %98 = vmatprep.subr.mxu0 0.0
    %99 = vmatpush1.msra.mxu0 0.0
    %100 = vmatprep.subr.mxu0 0.0
    %101 = vmatpush1.msra.mxu0 0.0
    %102 = vmatprep.subr.mxu0 0.0
    %103 = vmatpush1.msra.mxu0 0.0
    %104 = vmatprep.subr.mxu0 0.0
    %105 = vmatpush1.msra.mxu0 0.0
    %106 = vmatprep.subr.mxu0 0.0
    %107 = vmatpush1.msra.mxu0 0.0
    %108 = vmatprep.subr.mxu0 0.0
    %109 = vmatpush1.msra.mxu0 0.0
    %110 = vmatprep.mubr.f32.mxu0 0.0
    %111 = vmatmul.mubr.f32.gmra.mrb[0].mxu0 %v35
    %v112 = vpop.f32.mrb[0].mxu0
    %v113 = vadd.f32 0.0, %v112
    %v114 = vpop.f32.mrb[0].mxu0
    %115 = vmatprep.mubr.f32.mxu0 0.0
    %116 = vmatmul.mubr.f32.gmra.mrb[0].mxu0 %v38
    %v117 = vpop.f32.mrb[0].mxu0
    %v118 = vadd.f32 0.0, %v117
    %v119 = vpop.f32.mrb[0].mxu0
    %120 = vmatprep.mubr.f32.mxu0 0.0
    %121 = vmatmul.mubr.f32.gmra.mrb[0].mxu0 %v41
    %v122 = vpop.f32.mrb[0].mxu0
    %v123 = vadd.f32 0.0, %v122
    %v124 = vpop.f32.mrb[0].mxu0
    %125 = vmatprep.mubr.f32.mxu0 0.0
    %126 = vmatmul.mubr.f32.gmra.mrb[0].mxu0 %v44
    %v127 = vpop.f32.mrb[0].mxu0
    %v128 = vadd.f32 0.0, %v127
    %v129 = vpop.f32.mrb[0].mxu0
    %130 = vdwg.mxu0
    %v131 = vadd.f32 %v21, %v113
    %v132 = vadd.f32 %v22, %v118
    %v133 = vadd.f32 %v23, %v123
    %v134 = vadd.f32 %v24, %v128
    %135 = vst.msk [vmem:[#allocation2] sm:$0xff] %vm33, %v131
    %136 = vst.msk [vmem:[#allocation2 + $0x8] sm:$0xff] %vm33, %v132
    %137 = vst.msk [vmem:[#allocation2 + $0x10] sm:$0xff] %vm33, %v133
    %138 = vst.msk [vmem:[#allocation2 + $0x18] sm:$0xff] %vm33, %v134
    // Predicated region
    $region14: #{attention_forward.5} parent=1 // pred_check
      %p139 = pneg %p12
    $region15: #{attention_forward.5} parent=1 // pred_check_branch
      %141 = sbr.rel (%p139) target = $region17
    $region16: #{attention_forward.5} parent=1 // pred_region
      %v142 = vld [vmem:[#allocation2] sm:$0xff]
      %v143 = vld [vmem:[#allocation2 + $0x8] sm:$0xff]
      %v144 = vld [vmem:[#allocation2 + $0x10] sm:$0xff]
      %v145 = vld [vmem:[#allocation2 + $0x18] sm:$0xff]
      %146 = vst.msk [vmem:[#allocation3] sm:$0xff] %vm33, %v142
      %147 = vst.msk [vmem:[#allocation3 + $0x8] sm:$0xff] %vm33, %v143
      %148 = vst.msk [vmem:[#allocation3 + $0x10] sm:$0xff] %vm33, %v144
      %149 = vst.msk [vmem:[#allocation3 + $0x18] sm:$0xff] %vm33, %v145
    $region17: #{attention_forward.5} parent=1 // pred_fallthru
      _
    // Predicated region
    $region18: #{attention_forward.5} parent=1 // pred_check
      _
    $region19: #{attention_forward.5} parent=1 // pred_check_branch
      %151 = sbr.rel (0) target = $region21
    $region20: #{attention_forward.5} parent=1 // pred_region
      %s153 = ssub.s32 512, 512
      %154 = vsyncadd [#allocation4], %s153
      %s155 = sshll.u32 [#allocation3], 4
      %s156 = int_to_ptr.vmem [resolvable:$true] %s155
      %161 = dma.vmem_to_hbm [thread:$0]  %s156, 512, %s2, [#allocation4], 128, 128, 8
    $region21: #{attention_forward.5} parent=1 // pred_fallthru
      _
    // Predicated region
    $region22: #{attention_forward.5} parent=1 // pred_check
      _
    $region23: #{attention_forward.5} parent=1 // pred_check_branch
      %163 = sbr.rel (0) target = $region25
    $region24: #{attention_forward.5} parent=1 // pred_region
      %164 = dma.done [#allocation4], 512
    $region25: #{attention_forward.5} parent=1 // pred_fallthru
      _
    %165 = vsyncpa [#allocation4], 1

// kernel: attention_forward.4
$region0: #{attention_forward.4}
  #allocation0 [shape = 'u32[]', space=smem, size = 0x4, offset = 0x4, fixed_abs, tag = 'smem constant byte address 0x4 - core index']
  #allocation1 [shape = 'u32[144,128]{1,0:T(1,128)}', space=vmem, size = 0x12000, scoped, tag = 'internal scratch']
  #allocation2 [shape = 'f32[32,1]{1,0:T(8,128)}', space=vmem, size = 0x4000, scoped, tag = 'scratch operand']
  #allocation3 [shape = 'f32[32,1]{1,0:T(8,128)}', space=vmem, size = 0x4000, scoped, tag = 'scratch operand']
  #allocation4 [shape = 'f32[32,8]{1,0:T(8,128)}', space=vmem, size = 0x4000, scoped, tag = 'scratch operand']
  %s0 = inlined_call_operand.vmem [shape: f32[2,2,2,16,8], index: 0, kind: input, shape index: {}]
  %s1 = inlined_call_operand.vmem [shape: f32[2,2,16,8], index: 1, kind: input, shape index: {}]
  %s2 = inlined_call_operand.vmem [shape: f32[2,2,16,8], index: 2, kind: input, shape index: {}]
  %s3 = inlined_call_operand.vmem [shape: f32[2,2,2,16,8], index: 3, kind: output, shape index: {}]
  %s4 = sld [smem:[#allocation0]]
  $region61: #{attention_forward.4} parent=0
    _
  %s6 = ssub.s32 1, %s4
  %s7 = scalar_select 0, %s6, %s4
  loop: start=0, step=1, limit=6
  $region2: #{attention_forward.4} parent=0 // loop_pre_header
    _
  $region3: #{attention_forward.4} parent=0 // loop_header
    %s9 = sphi 0, %s13
    %p10 = scmp.ge.s32.totalorder %s9, 6
    %s16 = sphi 0, %s42
    %s17 = sphi 0, %s38
    %s18 = sphi 0, %s34
    %s19 = sphi 0, %s30
    %s20 = sphi 0, %s16
    %s21 = sphi 0, %s17
    %s22 = sphi 0, %s18
    %s23 = sphi 0, %s19
    %s24 = sphi 0, %s20
    %s25 = sphi 0, %s21
    %s26 = sphi 0, %s22
    %s27 = sphi 0, %s23
    %s49 = sphi 0, %s51
    %s52 = sphi 0, %s49
    %s53 = sphi 0, %s52
    %s69 = sphi 0, %s53
    %s83 = sphi 0, %s85
    %s86 = sphi 0, %s83
    %s87 = sphi 0, %s86
    %s103 = sphi 0, %s87
    %s117 = sphi 0, %s119
    %s120 = sphi 0, %s117
    %s121 = sphi 0, %s120
    %s137 = sphi 0, %s121
    %s147 = sphi 0, %s149
    %s150 = sphi 0, %s147
    %s151 = sphi 0, %s150
    %s167 = sphi 0, %s151
  $region4: #{attention_forward.4} parent=0 // loop_header_branch
    %12 = sbr.rel (%p10) target = $region8
  $region5: #{attention_forward.4} parent=0 // loop_body
    %s14 = ssub.s32 %s9, 1
    %s15 = ssub.s32 %s9, 2
    %s28 = sadd.s32 1, %s19
    %p29 = scmp.ge.s32.totalorder %s28, 1
    %s30 = scalar_select %p29, 0, %s28
    %s31 = sadd.s32 1, %s18
    %s32 = scalar_select %p29, %s31, %s18
    %p33 = scmp.ge.s32.totalorder %s32, 1
    %s34 = scalar_select %p33, 0, %s32
    %s35 = sadd.s32 1, %s17
    %s36 = scalar_select %p33, %s35, %s17
    %p37 = scmp.ge.s32.totalorder %s36, 2
    %s38 = scalar_select %p37, 0, %s36
    %s39 = sadd.s32 1, %s16
    %s40 = scalar_select %p37, %s39, %s16
    %p41 = scmp.ge.s32.totalorder %s40, 2
    %s42 = scalar_select %p41, 0, %s40
    %s43 = ssub.s32 %s16, %s42
    %s44 = ssub.s32 %s17, %s38
    %s45 = sor.u32 %s43, %s44
    %s46 = ssub.s32 %s18, %s34
    %s47 = sor.u32 %s45, %s46
    %p48 = scmp.eq.s32.totalorder %s47, 0
    %s50 = sadd.s32 %s49, 1
    %s51 = scalar_select %p48, %s49, %s50
    %p54 = pneg %p48
    %p55 = scmp.eq.s32.totalorder %s9, 3
    %p56 = por %p54, %p55
    %p57 = scmp.ne.s32.totalorder %s49, %s52
    %p58 = scmp.eq.s32.totalorder %s9, 0
    %p59 = por %p57, %p58
    %p60 = scmp.ne.s32.totalorder %s49, %s52
    %p61 = scmp.eq.s32.totalorder %s14, 3
    %p62 = por %p60, %p61
    %p63 = scmp.ne.s32.totalorder %s52, %s53
    %p64 = scmp.eq.s32.totalorder %s14, 0
    %p65 = por %p63, %p64
    %p66 = scmp.ne.s32.totalorder %s52, %s53
    %p67 = scmp.eq.s32.totalorder %s15, 3
    %p68 = por %p66, %p67
    %p70 = scmp.ne.s32.totalorder %s53, %s69
    %p71 = scmp.eq.s32.totalorder %s15, 0
    %p72 = por %p70, %p71
    %p73 = scmp.lt.s32.totalorder %s18, %s19
    %s74 = scalar_select %p73, %s18, %s19
    %p75 = scmp.lt.s32.totalorder %s34, %s30
    %s76 = scalar_select %p75, %s34, %s30
    %s77 = ssub.s32 %s16, %s42
    %s78 = ssub.s32 %s17, %s38
    %s79 = sor.u32 %s77, %s78
    %s80 = ssub.s32 %s74, %s76
    %s81 = sor.u32 %s79, %s80
    %p82 = scmp.eq.s32.totalorder %s81, 0
    %s84 = sadd.s32 %s83, 1
    %s85 = scalar_select %p82, %s83, %s84
    %p88 = pneg %p82
    %p89 = scmp.eq.s32.totalorder %s9, 3
    %p90 = por %p88, %p89
    %p91 = scmp.ne.s32.totalorder %s83, %s86
    %p92 = scmp.eq.s32.totalorder %s9, 0
    %p93 = por %p91, %p92
    %p94 = scmp.ne.s32.totalorder %s83, %s86
    %p95 = scmp.eq.s32.totalorder %s14, 3
    %p96 = por %p94, %p95
    %p97 = scmp.ne.s32.totalorder %s86, %s87
    %p98 = scmp.eq.s32.totalorder %s14, 0
    %p99 = por %p97, %p98
    %p100 = scmp.ne.s32.totalorder %s86, %s87
    %p101 = scmp.eq.s32.totalorder %s15, 3
    %p102 = por %p100, %p101
    %p104 = scmp.ne.s32.totalorder %s87, %s103
    %p105 = scmp.eq.s32.totalorder %s15, 0
    %p106 = por %p104, %p105
    %p107 = scmp.lt.s32.totalorder %s18, %s19
    %s108 = scalar_select %p107, %s18, %s19
    %p109 = scmp.lt.s32.totalorder %s34, %s30
    %s110 = scalar_select %p109, %s34, %s30
    %s111 = ssub.s32 %s16, %s42
    %s112 = ssub.s32 %s17, %s38
    %s113 = sor.u32 %s111, %s112
    %s114 = ssub.s32 %s108, %s110
    %s115 = sor.u32 %s113, %s114
    %p116 = scmp.eq.s32.totalorder %s115, 0
    %s118 = sadd.s32 %s117, 1
    %s119 = scalar_select %p116, %s117, %s118
    %p122 = pneg %p116
    %p123 = scmp.eq.s32.totalorder %s9, 3
    %p124 = por %p122, %p123
    %p125 = scmp.ne.s32.totalorder %s117, %s120
    %p126 = scmp.eq.s32.totalorder %s9, 0
    %p127 = por %p125, %p126
    %p128 = scmp.ne.s32.totalorder %s117, %s120
    %p129 = scmp.eq.s32.totalorder %s14, 3
    %p130 = por %p128, %p129
    %p131 = scmp.ne.s32.totalorder %s120, %s121
    %p132 = scmp.eq.s32.totalorder %s14, 0
    %p133 = por %p131, %p132
    %p134 = scmp.ne.s32.totalorder %s120, %s121
    %p135 = scmp.eq.s32.totalorder %s15, 3
    %p136 = por %p134, %p135
    %p138 = scmp.ne.s32.totalorder %s121, %s137
    %p139 = scmp.eq.s32.totalorder %s15, 0
    %p140 = por %p138, %p139
    %s141 = ssub.s32 %s16, %s42
    %s142 = ssub.s32 %s17, %s38
    %s143 = sor.u32 %s141, %s142
    %s144 = ssub.s32 %s18, %s34
    %s145 = sor.u32 %s143, %s144
    %p146 = scmp.eq.s32.totalorder %s145, 0
    %s148 = sadd.s32 %s147, 1
    %s149 = scalar_select %p146, %s147, %s148
    %p152 = pneg %p146
    %p153 = scmp.eq.s32.totalorder %s9, 3
    %p154 = por %p152, %p153
    %p155 = scmp.ne.s32.totalorder %s147, %s150
    %p156 = scmp.eq.s32.totalorder %s9, 0
    %p157 = por %p155, %p156
    %p158 = scmp.ne.s32.totalorder %s147, %s150
    %p159 = scmp.eq.s32.totalorder %s14, 3
    %p160 = por %p158, %p159
    %p161 = scmp.ne.s32.totalorder %s150, %s151
    %p162 = scmp.eq.s32.totalorder %s14, 0
    %p163 = por %p161, %p162
    %p164 = scmp.ne.s32.totalorder %s150, %s151
    %p165 = scmp.eq.s32.totalorder %s15, 3
    %p166 = por %p164, %p165
    %p168 = scmp.ne.s32.totalorder %s151, %s167
    %p169 = scmp.eq.s32.totalorder %s15, 0
    %p170 = por %p168, %p169
    %p171 = scmp.le.s32.totalorder 1, %s9
    %p172 = scmp.lt.s32.totalorder %s9, 5
    %p173 = pnand %p171, %p172
    %p174 = pneg %p173
    // Predicated region
    $region9: #{attention_forward.4} parent=5 // pred_check
      _
    $region10: #{attention_forward.4} parent=5 // pred_check_branch
      %176 = sbr.rel (%p173) target = $region12
    $region11: #{attention_forward.4} parent=5 // pred_region
      %s177 = ssub.s32 %s9, 1
    $region12: #{attention_forward.4} parent=5 // pred_fallthru
      _
    %p178 = scmp.lt.s32.totalorder %s9, 4
    // Predicated region
    $region13: #{attention_forward.4} parent=5 // pred_check
      %p179 = pneg %p178
    $region14: #{attention_forward.4} parent=5 // pred_check_branch
      %181 = sbr.rel (%p179) target = $region16
    $region15: #{attention_forward.4} parent=5 // pred_region
      // Predicated region
      $region17: #{attention_forward.4} parent=15 // pred_check
        %p182 = pneg %p59
      $region18: #{attention_forward.4} parent=15 // pred_check_branch
        %184 = sbr.rel (%p182) target = $region20
      $region19: #{attention_forward.4} parent=15 // pred_region
        %s185 = smul.u32 2, %s18
        %p186 = scmp.lt.s32.totalorder %s16, 1
        %s187 = scalar_select %p186, %s16, 1
        %p188 = scmp.lt.s32.totalorder %s17, 1
        %s189 = scalar_select %p188, %s17, 1
        %p190 = scmp.lt.s32.totalorder %s185, 1
        %s191 = scalar_select %p190, %s185, 1
        %s192 = smul.addr %s189, 4
        %s193 = sadd.s32 %s191, %s192
        %s194 = smul.addr %s187, 8
        %s195 = sadd.s32 %s193, %s194
        %s196 = smul.addr %s195, 8
        %s197 = scalar_lea.vmem %s0, %s196
        %s198 = smul.u32 2, %s18
      $region20: #{attention_forward.4} parent=15 // pred_fallthru
        _
      // Predicated region
      $region21: #{attention_forward.4} parent=15 // pred_check
        %p199 = pneg %p93
      $region22: #{attention_forward.4} parent=15 // pred_check_branch
        %201 = sbr.rel (%p199) target = $region24
      $region23: #{attention_forward.4} parent=15 // pred_region
        %p202 = scmp.lt.s32.totalorder %s18, %s19
        %s203 = scalar_select %p202, %s18, %s19
        %s204 = smul.u32 2, %s203
        %p205 = scmp.lt.s32.totalorder %s16, 1
        %s206 = scalar_select %p205, %s16, 1
        %p207 = scmp.lt.s32.totalorder %s17, 1
        %s208 = scalar_select %p207, %s17, 1
        %p209 = scmp.lt.s32.totalorder %s204, 1
        %s210 = scalar_select %p209, %s204, 1
        %s211 = smul.addr %s208, 2
        %s212 = sadd.s32 %s210, %s211
        %s213 = smul.addr %s206, 4
        %s214 = sadd.s32 %s212, %s213
        %s215 = smul.addr %s214, 8
        %s216 = scalar_lea.vmem %s1, %s215
        %p217 = scmp.lt.s32.totalorder %s18, %s19
        %s218 = scalar_select %p217, %s18, %s19
        %s219 = smul.u32 2, %s218
      $region24: #{attention_forward.4} parent=15 // pred_fallthru
        _
      // Predicated region
      $region25: #{attention_forward.4} parent=15 // pred_check
        %p220 = pneg %p127
      $region26: #{attention_forward.4} parent=15 // pred_check_branch
        %222 = sbr.rel (%p220) target = $region28
      $region27: #{attention_forward.4} parent=15 // pred_region
        %p223 = scmp.lt.s32.totalorder %s18, %s19
        %s224 = scalar_select %p223, %s18, %s19
        %s225 = smul.u32 2, %s224
        %p226 = scmp.lt.s32.totalorder %s16, 1
        %s227 = scalar_select %p226, %s16, 1
        %p228 = scmp.lt.s32.totalorder %s17, 1
        %s229 = scalar_select %p228, %s17, 1
        %p230 = scmp.lt.s32.totalorder %s225, 1
        %s231 = scalar_select %p230, %s225, 1
        %s232 = smul.addr %s229, 2
        %s233 = sadd.s32 %s231, %s232
        %s234 = smul.addr %s227, 4
        %s235 = sadd.s32 %s233, %s234
        %s236 = smul.addr %s235, 8
        %s237 = scalar_lea.vmem %s2, %s236
        %p238 = scmp.lt.s32.totalorder %s18, %s19
        %s239 = scalar_select %p238, %s18, %s19
        %s240 = smul.u32 2, %s239
      $region28: #{attention_forward.4} parent=15 // pred_fallthru
        _
    $region16: #{attention_forward.4} parent=5 // pred_fallthru
      _
    %p241 = scmp.le.s32.totalorder 1, %s9
    %p242 = scmp.lt.s32.totalorder %s9, 5
    %p243 = pnand %p241, %p242
    %p244 = pneg %p243
    // Predicated region
    $region29: #{attention_forward.4} parent=5 // pred_check
      _
    $region30: #{attention_forward.4} parent=5 // pred_check_branch
      %246 = sbr.rel (%p243) target = $region32
    $region31: #{attention_forward.4} parent=5 // pred_region
      %s247 = ssub.s32 %s9, 1
      %s248 = smul.u32 2, %s22
      %p249 = scmp.lt.s32.totalorder %s20, 1
      %s250 = scalar_select %p249, %s20, 1
      %p251 = scmp.lt.s32.totalorder %s21, 1
      %s252 = scalar_select %p251, %s21, 1
      %p253 = scmp.lt.s32.totalorder %s248, 1
      %s254 = scalar_select %p253, %s248, 1
      %s255 = smul.addr %s252, 4
      %s256 = sadd.s32 %s254, %s255
      %s257 = smul.addr %s250, 8
      %s258 = sadd.s32 %s256, %s257
      %s259 = smul.addr %s258, 8
      %s260 = scalar_lea.vmem %s0, %s259
      %p261 = pneg %p65
      %p262 = pneg %p62
      %p263 = scmp.lt.s32.totalorder %s22, %s23
      %s264 = scalar_select %p263, %s22, %s23
      %s265 = smul.u32 2, %s264
      %p266 = scmp.lt.s32.totalorder %s20, 1
      %s267 = scalar_select %p266, %s20, 1
      %p268 = scmp.lt.s32.totalorder %s21, 1
      %s269 = scalar_select %p268, %s21, 1
      %p270 = scmp.lt.s32.totalorder %s265, 1
      %s271 = scalar_select %p270, %s265, 1
      %s272 = smul.addr %s269, 2
      %s273 = sadd.s32 %s271, %s272
      %s274 = smul.addr %s267, 4
      %s275 = sadd.s32 %s273, %s274
      %s276 = smul.addr %s275, 8
      %s277 = scalar_lea.vmem %s1, %s276
      %p278 = pneg %p99
      %p279 = pneg %p96
      %p280 = scmp.lt.s32.totalorder %s22, %s23
      %s281 = scalar_select %p280, %s22, %s23
      %s282 = smul.u32 2, %s281
      %p283 = scmp.lt.s32.totalorder %s20, 1
      %s284 = scalar_select %p283, %s20, 1
      %p285 = scmp.lt.s32.totalorder %s21, 1
      %s286 = scalar_select %p285, %s21, 1
      %p287 = scmp.lt.s32.totalorder %s282, 1
      %s288 = scalar_select %p287, %s282, 1
      %s289 = smul.addr %s286, 2
      %s290 = sadd.s32 %s288, %s289
      %s291 = smul.addr %s284, 4
      %s292 = sadd.s32 %s290, %s291
      %s293 = smul.addr %s292, 8
      %s294 = scalar_lea.vmem %s2, %s293
      %p295 = pneg %p133
      %p296 = pneg %p130
      %p297 = pneg %p163
      %p298 = pneg %p160
      %s299 = smul.u32 2, %s22
      %p300 = scmp.lt.s32.totalorder %s20, 1
      %s301 = scalar_select %p300, %s20, 1
      %p302 = scmp.lt.s32.totalorder %s21, 1
      %s303 = scalar_select %p302, %s21, 1
      %p304 = scmp.lt.s32.totalorder %s299, 1
      %s305 = scalar_select %p304, %s299, 1
      %s306 = smul.addr %s303, 4
      %s307 = sadd.s32 %s305, %s306
      %s308 = smul.addr %s301, 8
      %s309 = sadd.s32 %s307, %s308
      %s310 = smul.addr %s309, 8
      %s311 = scalar_lea.vmem %s3, %s310
      %s312 = smul.u32 2, %s22
      %p313 = scmp.lt.s32.totalorder %s20, 1
      %s314 = scalar_select %p313, %s20, 1
      %p315 = scmp.lt.s32.totalorder %s21, 1
      %s316 = scalar_select %p315, %s21, 1
      %p317 = scmp.lt.s32.totalorder %s312, 1
      %s318 = scalar_select %p317, %s312, 1
      %s319 = smul.addr %s316, 4
      %s320 = sadd.s32 %s318, %s319
      %s321 = smul.addr %s314, 8
      %s322 = sadd.s32 %s320, %s321
      %s323 = smul.addr %s322, 8
      %s324 = scalar_lea.vmem %s0, %s323
      %s325 = smul.u32 2, %s22
      %p326 = scmp.lt.s32.totalorder %s22, %s23
      %s327 = scalar_select %p326, %s22, %s23
      %s328 = smul.u32 2, %s327
      %p329 = scmp.lt.s32.totalorder %s20, 1
      %s330 = scalar_select %p329, %s20, 1
      %p331 = scmp.lt.s32.totalorder %s21, 1
      %s332 = scalar_select %p331, %s21, 1
      %p333 = scmp.lt.s32.totalorder %s328, 1
      %s334 = scalar_select %p333, %s328, 1
      %s335 = smul.addr %s332, 2
      %s336 = sadd.s32 %s334, %s335
      %s337 = smul.addr %s330, 4
      %s338 = sadd.s32 %s336, %s337
      %s339 = smul.addr %s338, 8
      %s340 = scalar_lea.vmem %s1, %s339
      %p341 = scmp.lt.s32.totalorder %s22, %s23
      %s342 = scalar_select %p341, %s22, %s23
      %s343 = smul.u32 2, %s342
      %p344 = scmp.lt.s32.totalorder %s22, %s23
      %s345 = scalar_select %p344, %s22, %s23
      %s346 = smul.u32 2, %s345
      %p347 = scmp.lt.s32.totalorder %s20, 1
      %s348 = scalar_select %p347, %s20, 1
      %p349 = scmp.lt.s32.totalorder %s21, 1
      %s350 = scalar_select %p349, %s21, 1
      %p351 = scmp.lt.s32.totalorder %s346, 1
      %s352 = scalar_select %p351, %s346, 1
      %s353 = smul.addr %s350, 2
      %s354 = sadd.s32 %s352, %s353
      %s355 = smul.addr %s348, 4
      %s356 = sadd.s32 %s354, %s355
      %s357 = smul.addr %s356, 8
      %s358 = scalar_lea.vmem %s2, %s357
      %p359 = scmp.lt.s32.totalorder %s22, %s23
      %s360 = scalar_select %p359, %s22, %s23
      %s361 = smul.u32 2, %s360
      %s362 = smul.u32 2, %s22
      %p363 = scmp.lt.s32.totalorder %s20, 1
      %s364 = scalar_select %p363, %s20, 1
      %p365 = scmp.lt.s32.totalorder %s21, 1
      %s366 = scalar_select %p365, %s21, 1
      %p367 = scmp.lt.s32.totalorder %s362, 1
      %s368 = scalar_select %p367, %s362, 1
      %s369 = smul.addr %s366, 4
      %s370 = sadd.s32 %s368, %s369
      %s371 = smul.addr %s364, 8
      %s372 = sadd.s32 %s370, %s371
      %s373 = smul.addr %s372, 8
      %s374 = scalar_lea.vmem %s3, %s373
      %s375 = smul.u32 2, %s22
      %s376 = smul.u32 %s22, 16
      %s377 = smul.u32 %s23, 16
      %p378 = scmp.eq.s32.totalorder %s23, 0
      // Predicated region
      $region33: #{attention_forward.4} parent=31 // pred_check
        %p379 = pneg %p378
      $region34: #{attention_forward.4} parent=31 // pred_check_branch
        %381 = sbr.rel (%p379) target = $region36
      $region35: #{attention_forward.4} parent=31 // pred_region
        %vm382 = vcmask 7168
        %383 = vst.msk [vmem:[#allocation2] sm:$0xff] %vm382, -2.3819763e+38
        %384 = vst.msk [vmem:[#allocation2 + $0x8] sm:$0xff] %vm382, -2.3819763e+38
        %385 = vst.msk [vmem:[#allocation2 + $0x10] sm:$0xff] %vm382, -2.3819763e+38
        %386 = vst.msk [vmem:[#allocation2 + $0x18] sm:$0xff] %vm382, -2.3819763e+38
        %387 = vst.msk [vmem:[#allocation3] sm:$0xff] %vm382, 0.0
        %388 = vst.msk [vmem:[#allocation3 + $0x8] sm:$0xff] %vm382, 0.0
        %389 = vst.msk [vmem:[#allocation3 + $0x10] sm:$0xff] %vm382, 0.0
        %390 = vst.msk [vmem:[#allocation3 + $0x18] sm:$0xff] %vm382, 0.0
        %vm391 = vcmask 64512
        %392 = vst.msk [vmem:[#allocation4] sm:$0xff] %vm391, 0.0
        %393 = vst.msk [vmem:[#allocation4 + $0x8] sm:$0xff] %vm391, 0.0
        %394 = vst.msk [vmem:[#allocation4 + $0x10] sm:$0xff] %vm391, 0.0
        %395 = vst.msk [vmem:[#allocation4 + $0x18] sm:$0xff] %vm391, 0.0
      $region36: #{attention_forward.4} parent=31 // pred_fallthru
        _
      %s396 = sadd.s32 %s377, 15
      %p397 = scmp.le.s32.totalorder %s396, %s376
      %s398 = sadd.s32 %s376, 15
      %p399 = scmp.le.s32.totalorder %s377, %s398
      %p400 = scmp.gt.s32.totalorder %s396, %s376
      %p401 = pnand %p399, %p400
      %p402 = pneg %p401
      // Predicated region
      $region37: #{attention_forward.4} parent=31 // pred_check
        %p403 = pneg %p397
      $region38: #{attention_forward.4} parent=31 // pred_check_branch
        %405 = sbr.rel (%p403) target = $region40
      $region39: #{attention_forward.4} parent=31 // pred_region
        %v406 = vld [vmem:[%s324] sm:$0xff]
        %v407 = vld [vmem:[%s324 + $0x8] sm:$0xff]
        %v408 = vld [vmem:[%s324 + $0x10] sm:$0xff]
        %v409 = vld [vmem:[%s324 + $0x18] sm:$0xff]
        %v410 = vld [vmem:[%s340] sm:$0xff]
        %v411 = vld [vmem:[%s340 + $0x8] sm:$0xff]
        %v412 = vmul.f32 %v410, 0.35355338
        %v413 = vmul.f32 %v411, 0.35355338
        %v414 = vld [vmem:[%s358] sm:$0xff]
        %v415 = vld [vmem:[%s358 + $0x8] sm:$0xff]
        %vm416 = vcmask 64512
        %v418 = vsel %vm416, %v406, 0
        %v421 = vsel %vm416, %v407, 0
        %v424 = vsel %vm416, %v408, 0
        %v427 = vsel %vm416, %v409, 0
        %v430 = vsel %vm416, %v412, 0
        %v433 = vsel %vm416, %v413, 0
        %435 = vmatprep.subr.mxu0 0.0
        %436 = vmatpush1.xpose.msra.mxu0 %v430
        %437 = vmatprep.subr.mxu0 0.0
        %438 = vmatpush1.xpose.msra.mxu0 %v433
        %439 = vmatprep.subr.mxu0 0.0
        %440 = vmatpush1.xpose.msra.mxu0 0.0
        %441 = vmatprep.subr.mxu0 0.0
        %442 = vmatpush1.xpose.msra.mxu0 0.0
        %443 = vmatprep.subr.mxu0 0.0
        %444 = vmatpush1.xpose.msra.mxu0 0.0
        %445 = vmatprep.subr.mxu0 0.0
        %446 = vmatpush1.xpose.msra.mxu0 0.0
        %447 = vmatprep.subr.mxu0 0.0
        %448 = vmatpush1.xpose.msra.mxu0 0.0
        %449 = vmatprep.subr.mxu0 0.0
        %450 = vmatpush1.xpose.msra.mxu0 0.0
        %451 = vmatprep.subr.mxu0 0.0
        %452 = vmatpush1.xpose.msra.mxu0 0.0
        %453 = vmatprep.subr.mxu0 0.0
        %454 = vmatpush1.xpose.msra.mxu0 0.0
        %455 = vmatprep.subr.mxu0 0.0
        %456 = vmatpush1.xpose.msra.mxu0 0.0
        %457 = vmatprep.subr.mxu0 0.0
        %458 = vmatpush1.xpose.msra.mxu0 0.0
        %459 = vmatprep.subr.mxu0 0.0
        %460 = vmatpush1.xpose.msra.mxu0 0.0
        %461 = vmatprep.subr.mxu0 0.0
        %462 = vmatpush1.xpose.msra.mxu0 0.0
        %463 = vmatprep.subr.mxu0 0.0
        %464 = vmatpush1.xpose.msra.mxu0 0.0
        %465 = vmatprep.subr.mxu0 0.0
        %466 = vmatpush1.xpose.msra.mxu0 0.0
        %467 = vmatprep.subr.mxu0 0.0
        %468 = vmatpush1.xpose.msra.mxu0 0.0
        %469 = vmatprep.subr.mxu0 0.0
        %470 = vmatpush1.xpose.msra.mxu0 0.0
        %471 = vmatprep.subr.mxu0 0.0
        %472 = vmatpush1.xpose.msra.mxu0 0.0
        %473 = vmatprep.subr.mxu0 0.0
        %474 = vmatpush1.xpose.msra.mxu0 0.0
        %475 = vmatprep.subr.mxu0 0.0
        %476 = vmatpush1.xpose.msra.mxu0 0.0
        %477 = vmatprep.subr.mxu0 0.0
        %478 = vmatpush1.xpose.msra.mxu0 0.0
        %479 = vmatprep.subr.mxu0 0.0
        %480 = vmatpush1.xpose.msra.mxu0 0.0
        %481 = vmatprep.subr.mxu0 0.0
        %482 = vmatpush1.xpose.msra.mxu0 0.0
        %483 = vmatprep.subr.mxu0 0.0
        %484 = vmatpush1.xpose.msra.mxu0 0.0
        %485 = vmatprep.subr.mxu0 0.0
        %486 = vmatpush1.xpose.msra.mxu0 0.0
        %487 = vmatprep.subr.mxu0 0.0
        %488 = vmatpush1.xpose.msra.mxu0 0.0
        %489 = vmatprep.subr.mxu0 0.0
        %490 = vmatpush1.xpose.msra.mxu0 0.0
        %491 = vmatprep.subr.mxu0 0.0
        %492 = vmatpush1.xpose.msra.mxu0 0.0
        %493 = vmatprep.subr.mxu0 0.0
        %494 = vmatpush1.xpose.msra.mxu0 0.0
        %495 = vmatprep.subr.mxu0 0.0
        %496 = vmatpush1.xpose.msra.mxu0 0.0
        %497 = vmatprep.subr.mxu0 0.0
        %498 = vmatpush1.xpose.msra.mxu0 0.0
        %499 = vmatprep.mubr.f32.mxu0 0.0
        %500 = vmatmul.mubr.f32.gmra.mrb[0].mxu0 %v418
        %v501 = vpop.f32.mrb[0].mxu0
        %v502 = vadd.f32 0.0, %v501
        %v503 = vpop.f32.mrb[0].mxu0
        %504 = vmatprep.mubr.f32.mxu0 0.0
        %505 = vmatmul.mubr.f32.gmra.mrb[0].mxu0 %v421
        %v506 = vpop.f32.mrb[0].mxu0
        %v507 = vadd.f32 0.0, %v506
        %v508 = vpop.f32.mrb[0].mxu0
        %509 = vmatprep.mubr.f32.mxu0 0.0
        %510 = vmatmul.mubr.f32.gmra.mrb[0].mxu0 %v424
        %v511 = vpop.f32.mrb[0].mxu0
        %v512 = vadd.f32 0.0, %v511
        %v513 = vpop.f32.mrb[0].mxu0
        %514 = vmatprep.mubr.f32.mxu0 0.0
        %515 = vmatmul.mubr.f32.gmra.mrb[0].mxu0 %v427
        %v516 = vpop.f32.mrb[0].mxu0
        %v517 = vadd.f32 0.0, %v516
        %v518 = vpop.f32.mrb[0].mxu0
        %519 = vdwg.mxu0
        %v520 = vld [vmem:[#allocation2] sm:$0xff]
        %v521 = vld [vmem:[#allocation2 + $0x8] sm:$0xff]
        %v522 = vld [vmem:[#allocation2 + $0x10] sm:$0xff]
        %v523 = vld [vmem:[#allocation2 + $0x18] sm:$0xff]
        %vm524 = vcmask 130048
        %v525 = vsel %vm524, %v502, -inf
        %526 = vmax.xlane.f32.xlu0 %v525
        %v527 = vpop.xlane.xlu0 %526
        %v528 = vsel %vm524, %v507, -inf
        %529 = vmax.xlane.f32.xlu0 %v528
        %v530 = vpop.xlane.xlu0 %529
        %v531 = vsel %vm524, %v512, -inf
        %532 = vmax.xlane.f32.xlu0 %v531
        %v533 = vpop.xlane.xlu0 %532
        %v534 = vsel %vm524, %v517, -inf
        %535 = vmax.xlane.f32.xlu0 %v534
        %v536 = vpop.xlane.xlu0 %535
        %v537 = vmax.f32 %v520, %v527
        %v538 = vmax.f32 %v521, %v530
        %v539 = vmax.f32 %v522, %v533
        %v540 = vmax.f32 %v523, %v536
        %v541 = vsub.f32 %v520, %v537
        %v542 = vsub.f32 %v521, %v538
        %v543 = vsub.f32 %v522, %v539
        %v544 = vsub.f32 %v523, %v540
        %v545 = vmul.f32 %v541, 1.442695
        %v546 = vpow.pop %v545
        %v547 = vmul.f32 %v542, 1.442695
        %v548 = vpow.pop %v547
        %v549 = vmul.f32 %v543, 1.442695
        %v550 = vpow.pop %v549
        %v551 = vmul.f32 %v544, 1.442695
        %v552 = vpow.pop %v551
        %554 = vset.pattern.permute.xlu0 0
        %555 = vperm.xlu0 %554, %v537
        %v556 = vpop.permute.xlu0 %555
        %559 = vset.pattern.permute.xlu0 0
        %560 = vperm.xlu0 %559, %v538
        %v561 = vpop.permute.xlu0 %560
        %564 = vset.pattern.permute.xlu0 0
        %565 = vperm.xlu0 %564, %v539
        %v566 = vpop.permute.xlu0 %565
        %569 = vset.pattern.permute.xlu0 0
        %570 = vperm.xlu0 %569, %v540
        %v571 = vpop.permute.xlu0 %570
        %v573 = vsub.f32 %v502, %v556
        %v574 = vsub.f32 %v507, %v561
        %v575 = vsub.f32 %v512, %v566
        %v576 = vsub.f32 %v517, %v571
        %v577 = vmul.f32 %v573, 1.442695
        %v578 = vpow.pop %v577
        %v579 = vmul.f32 %v574, 1.442695
        %v580 = vpow.pop %v579
        %v581 = vmul.f32 %v575, 1.442695
        %v582 = vpow.pop %v581
        %v583 = vmul.f32 %v576, 1.442695
        %v584 = vpow.pop %v583
        %v585 = vld [vmem:[#allocation3] sm:$0xff]
        %v586 = vld [vmem:[#allocation3 + $0x8] sm:$0xff]
        %v587 = vld [vmem:[#allocation3 + $0x10] sm:$0xff]
        %v588 = vld [vmem:[#allocation3 + $0x18] sm:$0xff]
        %v589 = vmul.f32 %v546, %v585
        %v590 = vmul.f32 %v548, %v586
        %v591 = vmul.f32 %v550, %v587
        %v592 = vmul.f32 %v552, %v588
        %v593 = vsel %vm524, %v578, 0.0
        %594 = vadd.xlane.f32.xlu0 %v593
        %v595 = vpop.xlane.xlu0 %594
        %v596 = vsel %vm524, %v580, 0.0
        %597 = vadd.xlane.f32.xlu0 %v596
        %v598 = vpop.xlane.xlu0 %597
        %v599 = vsel %vm524, %v582, 0.0
        %600 = vadd.xlane.f32.xlu0 %v599
        %v601 = vpop.xlane.xlu0 %600
        %v602 = vsel %vm524, %v584, 0.0
        %603 = vadd.xlane.f32.xlu0 %v602
        %v604 = vpop.xlane.xlu0 %603
        %v605 = vadd.f32 %v589, %v595
        %v606 = vadd.f32 %v590, %v598
        %v607 = vadd.f32 %v591, %v601
        %v608 = vadd.f32 %v592, %v604
        %vm609 = vcmask 7168
        %610 = vst.msk [vmem:[#allocation3] sm:$0xff] %vm609, %v605
        %611 = vst.msk [vmem:[#allocation3 + $0x8] sm:$0xff] %vm609, %v606
        %612 = vst.msk [vmem:[#allocation3 + $0x10] sm:$0xff] %vm609, %v607
        %613 = vst.msk [vmem:[#allocation3 + $0x18] sm:$0xff] %vm609, %v608
        %v614 = vld [vmem:[#allocation4] sm:$0xff]
        %v615 = vld [vmem:[#allocation4 + $0x8] sm:$0xff]
        %v616 = vld [vmem:[#allocation4 + $0x10] sm:$0xff]
        %v617 = vld [vmem:[#allocation4 + $0x18] sm:$0xff]
        %619 = vset.pattern.permute.xlu0 0
        %620 = vperm.xlu0 %619, %v546
        %v621 = vpop.permute.xlu0 %620
        %624 = vset.pattern.permute.xlu0 0
        %625 = vperm.xlu0 %624, %v548
        %v626 = vpop.permute.xlu0 %625
        %629 = vset.pattern.permute.xlu0 0
        %630 = vperm.xlu0 %629, %v550
        %v631 = vpop.permute.xlu0 %630
        %634 = vset.pattern.permute.xlu0 0
        %635 = vperm.xlu0 %634, %v552
        %v636 = vpop.permute.xlu0 %635
        %v638 = vmul.f32 %v621, %v614
        %v639 = vmul.f32 %v626, %v615
        %v640 = vmul.f32 %v631, %v616
        %v641 = vmul.f32 %v636, %v617
        %v643 = vsel %vm524, %v578, 0
        %v646 = vsel %vm524, %v580, 0
        %v649 = vsel %vm524, %v582, 0
        %v652 = vsel %vm524, %v584, 0
        %654 = vmatprep.subr.mxu0 0.0
        %655 = vmatpush1.msra.mxu0 %v414
        %656 = vmatprep.subr.mxu0 0.0
        %657 = vmatpush1.msra.mxu0 %v415
        %658 = vmatprep.subr.mxu0 0.0
        %659 = vmatpush1.msra.mxu0 0.0
        %660 = vmatprep.subr.mxu0 0.0
        %661 = vmatpush1.msra.mxu0 0.0
        %662 = vmatprep.subr.mxu0 0.0
        %663 = vmatpush1.msra.mxu0 0.0
        %664 = vmatprep.subr.mxu0 0.0
        %665 = vmatpush1.msra.mxu0 0.0
        %666 = vmatprep.subr.mxu0 0.0
        %667 = vmatpush1.msra.mxu0 0.0
        %668 = vmatprep.subr.mxu0 0.0
        %669 = vmatpush1.msra.mxu0 0.0
        %670 = vmatprep.subr.mxu0 0.0
        %671 = vmatpush1.msra.mxu0 0.0
        %672 = vmatprep.subr.mxu0 0.0
        %673 = vmatpush1.msra.mxu0 0.0
        %674 = vmatprep.subr.mxu0 0.0
        %675 = vmatpush1.msra.mxu0 0.0
        %676 = vmatprep.subr.mxu0 0.0
        %677 = vmatpush1.msra.mxu0 0.0
        %678 = vmatprep.subr.mxu0 0.0
        %679 = vmatpush1.msra.mxu0 0.0
        %680 = vmatprep.subr.mxu0 0.0
        %681 = vmatpush1.msra.mxu0 0.0
        %682 = vmatprep.subr.mxu0 0.0
        %683 = vmatpush1.msra.mxu0 0.0
        %684 = vmatprep.subr.mxu0 0.0
        %685 = vmatpush1.msra.mxu0 0.0
        %686 = vmatprep.subr.mxu0 0.0
        %687 = vmatpush1.msra.mxu0 0.0
        %688 = vmatprep.subr.mxu0 0.0
        %689 = vmatpush1.msra.mxu0 0.0
        %690 = vmatprep.subr.mxu0 0.0
        %691 = vmatpush1.msra.mxu0 0.0
        %692 = vmatprep.subr.mxu0 0.0
        %693 = vmatpush1.msra.mxu0 0.0
        %694 = vmatprep.subr.mxu0 0.0
        %695 = vmatpush1.msra.mxu0 0.0
        %696 = vmatprep.subr.mxu0 0.0
        %697 = vmatpush1.msra.mxu0 0.0
        %698 = vmatprep.subr.mxu0 0.0
        %699 = vmatpush1.msra.mxu0 0.0
        %700 = vmatprep.subr.mxu0 0.0
        %701 = vmatpush1.msra.mxu0 0.0
        %702 = vmatprep.subr.mxu0 0.0
        %703 = vmatpush1.msra.mxu0 0.0
        %704 = vmatprep.subr.mxu0 0.0
        %705 = vmatpush1.msra.mxu0 0.0
        %706 = vmatprep.subr.mxu0 0.0
        %707 = vmatpush1.msra.mxu0 0.0
        %708 = vmatprep.subr.mxu0 0.0
        %709 = vmatpush1.msra.mxu0 0.0
        %710 = vmatprep.subr.mxu0 0.0
        %711 = vmatpush1.msra.mxu0 0.0
        %712 = vmatprep.subr.mxu0 0.0
        %713 = vmatpush1.msra.mxu0 0.0
        %714 = vmatprep.subr.mxu0 0.0
        %715 = vmatpush1.msra.mxu0 0.0
        %716 = vmatprep.subr.mxu0 0.0
        %717 = vmatpush1.msra.mxu0 0.0
        %718 = vmatprep.mubr.f32.mxu0 0.0
        %719 = vmatmul.mubr.f32.gmra.mrb[0].mxu0 %v643
        %v720 = vpop.f32.mrb[0].mxu0
        %v721 = vadd.f32 0.0, %v720
        %v722 = vpop.f32.mrb[0].mxu0
        %723 = vmatprep.mubr.f32.mxu0 0.0
        %724 = vmatmul.mubr.f32.gmra.mrb[0].mxu0 %v646
        %v725 = vpop.f32.mrb[0].mxu0
        %v726 = vadd.f32 0.0, %v725
        %v727 = vpop.f32.mrb[0].mxu0
        %728 = vmatprep.mubr.f32.mxu0 0.0
        %729 = vmatmul.mubr.f32.gmra.mrb[0].mxu0 %v649
        %v730 = vpop.f32.mrb[0].mxu0
        %v731 = vadd.f32 0.0, %v730
        %v732 = vpop.f32.mrb[0].mxu0
        %733 = vmatprep.mubr.f32.mxu0 0.0
        %734 = vmatmul.mubr.f32.gmra.mrb[0].mxu0 %v652
        %v735 = vpop.f32.mrb[0].mxu0
        %v736 = vadd.f32 0.0, %v735
        %v737 = vpop.f32.mrb[0].mxu0
        %738 = vdwg.mxu0
        %v739 = vadd.f32 %v638, %v721
        %v740 = vadd.f32 %v639, %v726
        %v741 = vadd.f32 %v640, %v731
        %v742 = vadd.f32 %v641, %v736
        %743 = vst.msk [vmem:[#allocation4] sm:$0xff] %vm416, %v739
        %744 = vst.msk [vmem:[#allocation4 + $0x8] sm:$0xff] %vm416, %v740
        %745 = vst.msk [vmem:[#allocation4 + $0x10] sm:$0xff] %vm416, %v741
        %746 = vst.msk [vmem:[#allocation4 + $0x18] sm:$0xff] %vm416, %v742
        %747 = vst.msk [vmem:[#allocation2] sm:$0xff] %vm609, %v537
        %748 = vst.msk [vmem:[#allocation2 + $0x8] sm:$0xff] %vm609, %v538
        %749 = vst.msk [vmem:[#allocation2 + $0x10] sm:$0xff] %vm609, %v539
        %750 = vst.msk [vmem:[#allocation2 + $0x18] sm:$0xff] %vm609, %v540
      $region40: #{attention_forward.4} parent=31 // pred_fallthru
        _
      // Predicated region
      $region41: #{attention_forward.4} parent=31 // pred_check
        _
      $region42: #{attention_forward.4} parent=31 // pred_check_branch
        %752 = sbr.rel (%p401) target = $region44
      $region43: #{attention_forward.4} parent=31 // pred_region
        %v753 = vld [vmem:[%s324] sm:$0xff]
        %v754 = vld [vmem:[%s324 + $0x8] sm:$0xff]
        %v755 = vld [vmem:[%s324 + $0x10] sm:$0xff]
        %v756 = vld [vmem:[%s324 + $0x18] sm:$0xff]
        %v757 = vld [vmem:[%s340] sm:$0xff]
        %v758 = vld [vmem:[%s340 + $0x8] sm:$0xff]
        %v759 = vmul.f32 %v757, 0.35355338
        %v760 = vmul.f32 %v758, 0.35355338
        %v761 = vld [vmem:[%s358] sm:$0xff]
        %v762 = vld [vmem:[%s358 + $0x8] sm:$0xff]
        %vm763 = vcmask 64512
        %v765 = vsel %vm763, %v753, 0
        %v768 = vsel %vm763, %v754, 0
        %v771 = vsel %vm763, %v755, 0
        %v774 = vsel %vm763, %v756, 0
        %v777 = vsel %vm763, %v759, 0
        %v780 = vsel %vm763, %v760, 0
        %782 = vmatprep.subr.mxu0 0.0
        %783 = vmatpush1.xpose.msra.mxu0 %v777
        %784 = vmatprep.subr.mxu0 0.0
        %785 = vmatpush1.xpose.msra.mxu0 %v780
        %786 = vmatprep.subr.mxu0 0.0
        %787 = vmatpush1.xpose.msra.mxu0 0.0
        %788 = vmatprep.subr.mxu0 0.0
        %789 = vmatpush1.xpose.msra.mxu0 0.0
        %790 = vmatprep.subr.mxu0 0.0
        %791 = vmatpush1.xpose.msra.mxu0 0.0
        %792 = vmatprep.subr.mxu0 0.0
        %793 = vmatpush1.xpose.msra.mxu0 0.0
        %794 = vmatprep.subr.mxu0 0.0
        %795 = vmatpush1.xpose.msra.mxu0 0.0
        %796 = vmatprep.subr.mxu0 0.0
        %797 = vmatpush1.xpose.msra.mxu0 0.0
        %798 = vmatprep.subr.mxu0 0.0
        %799 = vmatpush1.xpose.msra.mxu0 0.0
        %800 = vmatprep.subr.mxu0 0.0
        %801 = vmatpush1.xpose.msra.mxu0 0.0
        %802 = vmatprep.subr.mxu0 0.0
        %803 = vmatpush1.xpose.msra.mxu0 0.0
        %804 = vmatprep.subr.mxu0 0.0
        %805 = vmatpush1.xpose.msra.mxu0 0.0
        %806 = vmatprep.subr.mxu0 0.0
        %807 = vmatpush1.xpose.msra.mxu0 0.0
        %808 = vmatprep.subr.mxu0 0.0
        %809 = vmatpush1.xpose.msra.mxu0 0.0
        %810 = vmatprep.subr.mxu0 0.0
        %811 = vmatpush1.xpose.msra.mxu0 0.0
        %812 = vmatprep.subr.mxu0 0.0
        %813 = vmatpush1.xpose.msra.mxu0 0.0
        %814 = vmatprep.subr.mxu0 0.0
        %815 = vmatpush1.xpose.msra.mxu0 0.0
        %816 = vmatprep.subr.mxu0 0.0
        %817 = vmatpush1.xpose.msra.mxu0 0.0
        %818 = vmatprep.subr.mxu0 0.0
        %819 = vmatpush1.xpose.msra.mxu0 0.0
        %820 = vmatprep.subr.mxu0 0.0
        %821 = vmatpush1.xpose.msra.mxu0 0.0
        %822 = vmatprep.subr.mxu0 0.0
        %823 = vmatpush1.xpose.msra.mxu0 0.0
        %824 = vmatprep.subr.mxu0 0.0
        %825 = vmatpush1.xpose.msra.mxu0 0.0
        %826 = vmatprep.subr.mxu0 0.0
        %827 = vmatpush1.xpose.msra.mxu0 0.0
        %828 = vmatprep.subr.mxu0 0.0
        %829 = vmatpush1.xpose.msra.mxu0 0.0
        %830 = vmatprep.subr.mxu0 0.0
        %831 = vmatpush1.xpose.msra.mxu0 0.0
        %832 = vmatprep.subr.mxu0 0.0
        %833 = vmatpush1.xpose.msra.mxu0 0.0
        %834 = vmatprep.subr.mxu0 0.0
        %835 = vmatpush1.xpose.msra.mxu0 0.0
        %836 = vmatprep.subr.mxu0 0.0
        %837 = vmatpush1.xpose.msra.mxu0 0.0
        %838 = vmatprep.subr.mxu0 0.0
        %839 = vmatpush1.xpose.msra.mxu0 0.0
        %840 = vmatprep.subr.mxu0 0.0
        %841 = vmatpush1.xpose.msra.mxu0 0.0
        %842 = vmatprep.subr.mxu0 0.0
        %843 = vmatpush1.xpose.msra.mxu0 0.0
        %844 = vmatprep.subr.mxu0 0.0
        %845 = vmatpush1.xpose.msra.mxu0 0.0
        %846 = vmatprep.mubr.f32.mxu0 0.0
        %847 = vmatmul.mubr.f32.gmra.mrb[0].mxu0 %v765
        %v848 = vpop.f32.mrb[0].mxu0
        %v849 = vadd.f32 0.0, %v848
        %v850 = vpop.f32.mrb[0].mxu0
        %851 = vmatprep.mubr.f32.mxu0 0.0
        %852 = vmatmul.mubr.f32.gmra.mrb[0].mxu0 %v768
        %v853 = vpop.f32.mrb[0].mxu0
        %v854 = vadd.f32 0.0, %v853
        %v855 = vpop.f32.mrb[0].mxu0
        %856 = vmatprep.mubr.f32.mxu0 0.0
        %857 = vmatmul.mubr.f32.gmra.mrb[0].mxu0 %v771
        %v858 = vpop.f32.mrb[0].mxu0
        %v859 = vadd.f32 0.0, %v858
        %v860 = vpop.f32.mrb[0].mxu0
        %861 = vmatprep.mubr.f32.mxu0 0.0
        %862 = vmatmul.mubr.f32.gmra.mrb[0].mxu0 %v774
        %v863 = vpop.f32.mrb[0].mxu0
        %v864 = vadd.f32 0.0, %v863
        %v865 = vpop.f32.mrb[0].mxu0
        %866 = vdwg.mxu0
        %v867 = vlaneseq
        %v868 = vshrl.u32 %v867, 7
        %v869 = vadd.s32 %v868, 8
        %v870 = vadd.s32 %v868, 16
        %v871 = vadd.s32 %v868, 24
        %vm872 = vcmp.lt.s32.totalorder %v868, 0
        %v873 = vsub.s32 0, %v868
        %v874 = vsel %vm872, %v873, %v868
        %v875 = vshrl.u32 %v874, 4
        %v876 = vand.u32 %v874, 15
        %v877 = vsub.s32 0, %v876
        %v878 = vsel %vm872, %v877, %v876
        %vm879 = vcmp.lt.s32.totalorder %v869, 0
        %v880 = vsub.s32 0, %v869
        %v881 = vsel %vm879, %v880, %v869
        %v882 = vshrl.u32 %v881, 4
        %v883 = vand.u32 %v881, 15
        %v884 = vsub.s32 0, %v883
        %v885 = vsel %vm879, %v884, %v883
        %vm886 = vcmp.lt.s32.totalorder %v870, 0
        %v887 = vsub.s32 0, %v870
        %v888 = vsel %vm886, %v887, %v870
        %v889 = vshrl.u32 %v888, 4
        %v890 = vand.u32 %v888, 15
        %v891 = vsub.s32 0, %v890
        %v892 = vsel %vm886, %v891, %v890
        %vm893 = vcmp.lt.s32.totalorder %v871, 0
        %v894 = vsub.s32 0, %v871
        %v895 = vsel %vm893, %v894, %v871
        %v896 = vshrl.u32 %v895, 4
        %v897 = vand.u32 %v895, 15
        %v898 = vsub.s32 0, %v897
        %v899 = vsel %vm893, %v898, %v897
        %vm900 = vcmp.ne.s32.totalorder %v878, 0
        %vm901 = vcmp.ne.s32.totalorder %v885, 0
        %vm902 = vcmp.ne.s32.totalorder %v892, 0
        %vm903 = vcmp.ne.s32.totalorder %v899, 0
        %vm904 = vcmp.lt.s32.totalorder %v878, 0
        %vm905 = vcmp.lt.s32.totalorder %v885, 0
        %vm906 = vcmp.lt.s32.totalorder %v892, 0
        %vm907 = vcmp.lt.s32.totalorder %v899, 0
        %vm908 = vmand %vm904, %vm900
        %vm909 = vmand %vm905, %vm901
        %vm910 = vmand %vm906, %vm902
        %vm911 = vmand %vm907, %vm903
        %v912 = vadd.s32 %v878, 16
        %v913 = vadd.s32 %v885, 16
        %v914 = vadd.s32 %v892, 16
        %v915 = vadd.s32 %v899, 16
        %v916 = vsel %vm908, %v912, %v878
        %v917 = vsel %vm909, %v913, %v885
        %v918 = vsel %vm910, %v914, %v892
        %v919 = vsel %vm911, %v915, %v899
        %v920 = vstv %s376
        %v921 = vadd.s32 %v920, %v916
        %v922 = vadd.s32 %v920, %v917
        %v923 = vadd.s32 %v920, %v918
        %v924 = vadd.s32 %v920, %v919
        %v925 = vlaneseq
        %v926 = vand.u32 %v925, 127
        %v927 = vstv %s377
        %v928 = vadd.s32 %v927, %v926
        %vm929 = vcmp.le.s32.totalorder %v928, %v921
        %vm930 = vcmp.le.s32.totalorder %v928, %v922
        %vm931 = vcmp.le.s32.totalorder %v928, %v923
        %vm932 = vcmp.le.s32.totalorder %v928, %v924
        %v933 = vsel %vm929, %v849, -2.3819763e+38
        %v934 = vsel %vm930, %v854, -2.3819763e+38
        %v935 = vsel %vm931, %v859, -2.3819763e+38
        %v936 = vsel %vm932, %v864, -2.3819763e+38
        %v937 = vld [vmem:[#allocation2] sm:$0xff]
        %v938 = vld [vmem:[#allocation2 + $0x8] sm:$0xff]
        %v939 = vld [vmem:[#allocation2 + $0x10] sm:$0xff]
        %v940 = vld [vmem:[#allocation2 + $0x18] sm:$0xff]
        %vm941 = vcmask 130048
        %v942 = vsel %vm941, %v933, -inf
        %943 = vmax.xlane.f32.xlu0 %v942
        %v944 = vpop.xlane.xlu0 %943
        %v945 = vsel %vm941, %v934, -inf
        %946 = vmax.xlane.f32.xlu0 %v945
        %v947 = vpop.xlane.xlu0 %946
        %v948 = vsel %vm941, %v935, -inf
        %949 = vmax.xlane.f32.xlu0 %v948
        %v950 = vpop.xlane.xlu0 %949
        %v951 = vsel %vm941, %v936, -inf
        %952 = vmax.xlane.f32.xlu0 %v951
        %v953 = vpop.xlane.xlu0 %952
        %v954 = vmax.f32 %v937, %v944
        %v955 = vmax.f32 %v938, %v947
        %v956 = vmax.f32 %v939, %v950
        %v957 = vmax.f32 %v940, %v953
        %v958 = vsub.f32 %v937, %v954
        %v959 = vsub.f32 %v938, %v955
        %v960 = vsub.f32 %v939, %v956
        %v961 = vsub.f32 %v940, %v957
        %v962 = vmul.f32 %v958, 1.442695
        %v963 = vpow.pop %v962
        %v964 = vmul.f32 %v959, 1.442695
        %v965 = vpow.pop %v964
        %v966 = vmul.f32 %v960, 1.442695
        %v967 = vpow.pop %v966
        %v968 = vmul.f32 %v961, 1.442695
        %v969 = vpow.pop %v968
        %971 = vset.pattern.permute.xlu0 0
        %972 = vperm.xlu0 %971, %v954
        %v973 = vpop.permute.xlu0 %972
        %976 = vset.pattern.permute.xlu0 0
        %977 = vperm.xlu0 %976, %v955
        %v978 = vpop.permute.xlu0 %977
        %981 = vset.pattern.permute.xlu0 0
        %982 = vperm.xlu0 %981, %v956
        %v983 = vpop.permute.xlu0 %982
        %986 = vset.pattern.permute.xlu0 0
        %987 = vperm.xlu0 %986, %v957
        %v988 = vpop.permute.xlu0 %987
        %v990 = vsub.f32 %v933, %v973
        %v991 = vsub.f32 %v934, %v978
        %v992 = vsub.f32 %v935, %v983
        %v993 = vsub.f32 %v936, %v988
        %v994 = vmul.f32 %v990, 1.442695
        %v995 = vpow.pop %v994
        %v996 = vmul.f32 %v991, 1.442695
        %v997 = vpow.pop %v996
        %v998 = vmul.f32 %v992, 1.442695
        %v999 = vpow.pop %v998
        %v1000 = vmul.f32 %v993, 1.442695
        %v1001 = vpow.pop %v1000
        %v1002 = vld [vmem:[#allocation3] sm:$0xff]
        %v1003 = vld [vmem:[#allocation3 + $0x8] sm:$0xff]
        %v1004 = vld [vmem:[#allocation3 + $0x10] sm:$0xff]
        %v1005 = vld [vmem:[#allocation3 + $0x18] sm:$0xff]
        %v1006 = vmul.f32 %v963, %v1002
        %v1007 = vmul.f32 %v965, %v1003
        %v1008 = vmul.f32 %v967, %v1004
        %v1009 = vmul.f32 %v969, %v1005
        %v1010 = vsel %vm941, %v995, 0.0
        %1011 = vadd.xlane.f32.xlu0 %v1010
        %v1012 = vpop.xlane.xlu0 %1011
        %v1013 = vsel %vm941, %v997, 0.0
        %1014 = vadd.xlane.f32.xlu0 %v1013
        %v1015 = vpop.xlane.xlu0 %1014
        %v1016 = vsel %vm941, %v999, 0.0
        %1017 = vadd.xlane.f32.xlu0 %v1016
        %v1018 = vpop.xlane.xlu0 %1017
        %v1019 = vsel %vm941, %v1001, 0.0
        %1020 = vadd.xlane.f32.xlu0 %v1019
        %v1021 = vpop.xlane.xlu0 %1020
        %v1022 = vadd.f32 %v1006, %v1012
        %v1023 = vadd.f32 %v1007, %v1015
        %v1024 = vadd.f32 %v1008, %v1018
        %v1025 = vadd.f32 %v1009, %v1021
        %vm1026 = vcmask 7168
        %1027 = vst.msk [vmem:[#allocation3] sm:$0xff] %vm1026, %v1022
        %1028 = vst.msk [vmem:[#allocation3 + $0x8] sm:$0xff] %vm1026, %v1023
        %1029 = vst.msk [vmem:[#allocation3 + $0x10] sm:$0xff] %vm1026, %v1024
        %1030 = vst.msk [vmem:[#allocation3 + $0x18] sm:$0xff] %vm1026, %v1025
        %v1031 = vld [vmem:[#allocation4] sm:$0xff]
        %v1032 = vld [vmem:[#allocation4 + $0x8] sm:$0xff]
        %v1033 = vld [vmem:[#allocation4 + $0x10] sm:$0xff]
        %v1034 = vld [vmem:[#allocation4 + $0x18] sm:$0xff]
        %1036 = vset.pattern.permute.xlu0 0
        %1037 = vperm.xlu0 %1036, %v963
        %v1038 = vpop.permute.xlu0 %1037
        %1041 = vset.pattern.permute.xlu0 0
        %1042 = vperm.xlu0 %1041, %v965
        %v1043 = vpop.permute.xlu0 %1042
        %1046 = vset.pattern.permute.xlu0 0
        %1047 = vperm.xlu0 %1046, %v967
        %v1048 = vpop.permute.xlu0 %1047
        %1051 = vset.pattern.permute.xlu0 0
        %1052 = vperm.xlu0 %1051, %v969
        %v1053 = vpop.permute.xlu0 %1052
        %v1055 = vmul.f32 %v1038, %v1031
        %v1056 = vmul.f32 %v1043, %v1032
        %v1057 = vmul.f32 %v1048, %v1033
        %v1058 = vmul.f32 %v1053, %v1034
        %v1060 = vsel %vm941, %v995, 0
        %v1063 = vsel %vm941, %v997, 0
        %v1066 = vsel %vm941, %v999, 0
        %v1069 = vsel %vm941, %v1001, 0
        %1071 = vmatprep.subr.mxu0 0.0
        %1072 = vmatpush1.msra.mxu0 %v761
        %1073 = vmatprep.subr.mxu0 0.0
        %1074 = vmatpush1.msra.mxu0 %v762
        %1075 = vmatprep.subr.mxu0 0.0
        %1076 = vmatpush1.msra.mxu0 0.0
        %1077 = vmatprep.subr.mxu0 0.0
        %1078 = vmatpush1.msra.mxu0 0.0
        %1079 = vmatprep.subr.mxu0 0.0
        %1080 = vmatpush1.msra.mxu0 0.0
        %1081 = vmatprep.subr.mxu0 0.0
        %1082 = vmatpush1.msra.mxu0 0.0
        %1083 = vmatprep.subr.mxu0 0.0
        %1084 = vmatpush1.msra.mxu0 0.0
        %1085 = vmatprep.subr.mxu0 0.0
        %1086 = vmatpush1.msra.mxu0 0.0
        %1087 = vmatprep.subr.mxu0 0.0
        %1088 = vmatpush1.msra.mxu0 0.0
        %1089 = vmatprep.subr.mxu0 0.0
        %1090 = vmatpush1.msra.mxu0 0.0
        %1091 = vmatprep.subr.mxu0 0.0
        %1092 = vmatpush1.msra.mxu0 0.0
        %1093 = vmatprep.subr.mxu0 0.0
        %1094 = vmatpush1.msra.mxu0 0.0
        %1095 = vmatprep.subr.mxu0 0.0
        %1096 = vmatpush1.msra.mxu0 0.0
        %1097 = vmatprep.subr.mxu0 0.0
        %1098 = vmatpush1.msra.mxu0 0.0
        %1099 = vmatprep.subr.mxu0 0.0
        %1100 = vmatpush1.msra.mxu0 0.0
        %1101 = vmatprep.subr.mxu0 0.0
        %1102 = vmatpush1.msra.mxu0 0.0
        %1103 = vmatprep.subr.mxu0 0.0
        %1104 = vmatpush1.msra.mxu0 0.0
        %1105 = vmatprep.subr.mxu0 0.0
        %1106 = vmatpush1.msra.mxu0 0.0
        %1107 = vmatprep.subr.mxu0 0.0
        %1108 = vmatpush1.msra.mxu0 0.0
        %1109 = vmatprep.subr.mxu0 0.0
        %1110 = vmatpush1.msra.mxu0 0.0
        %1111 = vmatprep.subr.mxu0 0.0
        %1112 = vmatpush1.msra.mxu0 0.0
        %1113 = vmatprep.subr.mxu0 0.0
        %1114 = vmatpush1.msra.mxu0 0.0
        %1115 = vmatprep.subr.mxu0 0.0
        %1116 = vmatpush1.msra.mxu0 0.0
        %1117 = vmatprep.subr.mxu0 0.0
        %1118 = vmatpush1.msra.mxu0 0.0
        %1119 = vmatprep.subr.mxu0 0.0
        %1120 = vmatpush1.msra.mxu0 0.0
        %1121 = vmatprep.subr.mxu0 0.0
        %1122 = vmatpush1.msra.mxu0 0.0
        %1123 = vmatprep.subr.mxu0 0.0
        %1124 = vmatpush1.msra.mxu0 0.0
        %1125 = vmatprep.subr.mxu0 0.0
        %1126 = vmatpush1.msra.mxu0 0.0
        %1127 = vmatprep.subr.mxu0 0.0
        %1128 = vmatpush1.msra.mxu0 0.0
        %1129 = vmatprep.subr.mxu0 0.0
        %1130 = vmatpush1.msra.mxu0 0.0
        %1131 = vmatprep.subr.mxu0 0.0
        %1132 = vmatpush1.msra.mxu0 0.0
        %1133 = vmatprep.subr.mxu0 0.0
        %1134 = vmatpush1.msra.mxu0 0.0
        %1135 = vmatprep.mubr.f32.mxu0 0.0
        %1136 = vmatmul.mubr.f32.gmra.mrb[0].mxu0 %v1060
        %v1137 = vpop.f32.mrb[0].mxu0
        %v1138 = vadd.f32 0.0, %v1137
        %v1139 = vpop.f32.mrb[0].mxu0
        %1140 = vmatprep.mubr.f32.mxu0 0.0
        %1141 = vmatmul.mubr.f32.gmra.mrb[0].mxu0 %v1063
        %v1142 = vpop.f32.mrb[0].mxu0
        %v1143 = vadd.f32 0.0, %v1142
        %v1144 = vpop.f32.mrb[0].mxu0
        %1145 = vmatprep.mubr.f32.mxu0 0.0
        %1146 = vmatmul.mubr.f32.gmra.mrb[0].mxu0 %v1066
        %v1147 = vpop.f32.mrb[0].mxu0
        %v1148 = vadd.f32 0.0, %v1147
        %v1149 = vpop.f32.mrb[0].mxu0
        %1150 = vmatprep.mubr.f32.mxu0 0.0
        %1151 = vmatmul.mubr.f32.gmra.mrb[0].mxu0 %v1069
        %v1152 = vpop.f32.mrb[0].mxu0
        %v1153 = vadd.f32 0.0, %v1152
        %v1154 = vpop.f32.mrb[0].mxu0
        %1155 = vdwg.mxu0
        %v1156 = vadd.f32 %v1055, %v1138
        %v1157 = vadd.f32 %v1056, %v1143
        %v1158 = vadd.f32 %v1057, %v1148
        %v1159 = vadd.f32 %v1058, %v1153
        %1160 = vst.msk [vmem:[#allocation4] sm:$0xff] %vm763, %v1156
        %1161 = vst.msk [vmem:[#allocation4 + $0x8] sm:$0xff] %vm763, %v1157
        %1162 = vst.msk [vmem:[#allocation4 + $0x10] sm:$0xff] %vm763, %v1158
        %1163 = vst.msk [vmem:[#allocation4 + $0x18] sm:$0xff] %vm763, %v1159
        %1164 = vst.msk [vmem:[#allocation2] sm:$0xff] %vm1026, %v954
        %1165 = vst.msk [vmem:[#allocation2 + $0x8] sm:$0xff] %vm1026, %v955
        %1166 = vst.msk [vmem:[#allocation2 + $0x10] sm:$0xff] %vm1026, %v956
        %1167 = vst.msk [vmem:[#allocation2 + $0x18] sm:$0xff] %vm1026, %v957
      $region44: #{attention_forward.4} parent=31 // pred_fallthru
        _
      // Predicated region
      $region45: #{attention_forward.4} parent=31 // pred_check
        %p1168 = pneg %p378
      $region46: #{attention_forward.4} parent=31 // pred_check_branch
        %1170 = sbr.rel (%p1168) target = $region48
      $region47: #{attention_forward.4} parent=31 // pred_region
        %v1171 = vld [vmem:[#allocation3] sm:$0xff]
        %v1172 = vld [vmem:[#allocation3 + $0x8] sm:$0xff]
        %v1173 = vld [vmem:[#allocation3 + $0x10] sm:$0xff]
        %v1174 = vld [vmem:[#allocation3 + $0x18] sm:$0xff]
        %v1175 = vrcp.pop %v1171
        %v1176 = vrcp.pop %v1172
        %v1177 = vrcp.pop %v1173
        %v1178 = vrcp.pop %v1174
        %v1179 = vld [vmem:[#allocation4] sm:$0xff]
        %v1180 = vld [vmem:[#allocation4 + $0x8] sm:$0xff]
        %v1181 = vld [vmem:[#allocation4 + $0x10] sm:$0xff]
        %v1182 = vld [vmem:[#allocation4 + $0x18] sm:$0xff]
        %1184 = vset.pattern.permute.xlu0 0
        %1185 = vperm.xlu0 %1184, %v1175
        %v1186 = vpop.permute.xlu0 %1185
        %1189 = vset.pattern.permute.xlu0 0
        %1190 = vperm.xlu0 %1189, %v1176
        %v1191 = vpop.permute.xlu0 %1190
        %1194 = vset.pattern.permute.xlu0 0
        %1195 = vperm.xlu0 %1194, %v1177
        %v1196 = vpop.permute.xlu0 %1195
        %1199 = vset.pattern.permute.xlu0 0
        %1200 = vperm.xlu0 %1199, %v1178
        %v1201 = vpop.permute.xlu0 %1200
        %v1203 = vmul.f32 %v1179, %v1186
        %v1204 = vmul.f32 %v1180, %v1191
        %v1205 = vmul.f32 %v1181, %v1196
        %v1206 = vmul.f32 %v1182, %v1201
        %vm1207 = vcmask 64512
        %1208 = vst.msk [vmem:[%s374] sm:$0xff] %vm1207, %v1203
        %1209 = vst.msk [vmem:[%s374 + $0x8] sm:$0xff] %vm1207, %v1204
        %1210 = vst.msk [vmem:[%s374 + $0x10] sm:$0xff] %vm1207, %v1205
        %1211 = vst.msk [vmem:[%s374 + $0x18] sm:$0xff] %vm1207, %v1206
      $region48: #{attention_forward.4} parent=31 // pred_fallthru
        _
      %s1212 = smul.u32 2, %s22
      %p1213 = scmp.lt.s32.totalorder %s20, 1
      %s1214 = scalar_select %p1213, %s20, 1
      %p1215 = scmp.lt.s32.totalorder %s21, 1
      %s1216 = scalar_select %p1215, %s21, 1
      %p1217 = scmp.lt.s32.totalorder %s1212, 1
      %s1218 = scalar_select %p1217, %s1212, 1
      %s1219 = smul.addr %s1216, 4
      %s1220 = sadd.s32 %s1218, %s1219
      %s1221 = smul.addr %s1214, 8
      %s1222 = sadd.s32 %s1220, %s1221
      %s1223 = smul.addr %s1222, 8
      %s1224 = scalar_lea.vmem %s3, %s1223
      // Predicated region
      $region49: #{attention_forward.4} parent=31 // pred_check
        %p1225 = pneg %p160
      $region50: #{attention_forward.4} parent=31 // pred_check_branch
        %1227 = sbr.rel (%p1225) target = $region52
      $region51: #{attention_forward.4} parent=31 // pred_region
        %s1228 = smul.u32 2, %s22
      $region52: #{attention_forward.4} parent=31 // pred_fallthru
        _
    $region32: #{attention_forward.4} parent=5 // pred_fallthru
      _
    %p1229 = scmp.le.s32.totalorder 2, %s9
    // Predicated region
    $region53: #{attention_forward.4} parent=5 // pred_check
      %p1230 = pneg %p1229
    $region54: #{attention_forward.4} parent=5 // pred_check_branch
      %1232 = sbr.rel (%p1230) target = $region56
    $region55: #{attention_forward.4} parent=5 // pred_region
      %s1233 = ssub.s32 %s9, 2
      // Predicated region
      $region57: #{attention_forward.4} parent=55 // pred_check
        %p1234 = pneg %p166
      $region58: #{attention_forward.4} parent=55 // pred_check_branch
        %1236 = sbr.rel (%p1234) target = $region60
      $region59: #{attention_forward.4} parent=55 // pred_region
        %s1237 = smul.u32 2, %s26
        %p1238 = scmp.lt.s32.totalorder %s24, 1
        %s1239 = scalar_select %p1238, %s24, 1
        %p1240 = scmp.lt.s32.totalorder %s25, 1
        %s1241 = scalar_select %p1240, %s25, 1
        %p1242 = scmp.lt.s32.totalorder %s1237, 1
        %s1243 = scalar_select %p1242, %s1237, 1
        %s1244 = smul.addr %s1241, 4
        %s1245 = sadd.s32 %s1243, %s1244
        %s1246 = smul.addr %s1239, 8
        %s1247 = sadd.s32 %s1245, %s1246
        %s1248 = smul.addr %s1247, 8
        %s1249 = scalar_lea.vmem %s3, %s1248
      $region60: #{attention_forward.4} parent=55 // pred_fallthru
        _
    $region56: #{attention_forward.4} parent=5 // pred_fallthru
      _
  $region6: #{attention_forward.4} parent=0 // loop_footer
    %s13 = sadd.s32 1, %s9
  $region7: #{attention_forward.4} parent=0 // loop_footer_branch
    %8 = sbr.rel target = $region3
  $region8: #{attention_forward.4} parent=0 // loop_exit
    _

</llo_original>
